<compile_context>
chip_gen: v7x
topology: tpu7x:2x2x1
jax: 0.10.0
libtpu: 0.0.40
codegen_flags: <defaults>
</compile_context>

<pallas_src>
import jax
import jax.numpy as jnp
from jax.experimental import pallas as pl
from jax.experimental.pallas import tpu as pltpu

# ----- model dims (small, consistent with the module's forward) -------------
VOCAB   = 64    # vocabulary size for w_emb
EMB_D   = 32    # word embedding dim
HID     = 32    # GRU hidden dim (q_emb)
MLP_HID = 64    # classifier hidden dim
N_CLS   = 16    # number of classes
B       = 2     # batch
T       = 8     # question length (tokens)

# ----- TPU-friendly padded dims ---------------------------------------------
B_PAD   = 8     # batch rows padded to one sublane group
MLP_PAD = 128   # classifier hidden padded to a full lane width
CLS_PAD = 128   # classifier output padded to a full lane width (lane-dense store)


def _question_classifier_kernel(
    q_ref, idx_ref, lam_ref,            # SMEM: [B,T] i32, [B] i32, [1] f32
    emb_ref,                            # VMEM: [VOCAB, D] f32 embedding table
    wih_ref, bih_ref,                   # [D, 3H] bf16, [1, 3H] f32 (input projection, fused gates)
    whr_ref, whz_ref, whn_ref,          # [H, H] bf16 each (per-gate hidden weights)
    bhr_ref, bhz_ref, bhn_ref,          # [1, H] f32 each
    w1_ref, b1_ref,                     # [H, MLP_PAD] bf16, [1, MLP_PAD] f32
    w2_ref, b2_ref,                     # [MLP_PAD, CLS_PAD] bf16, [1, CLS_PAD] f32
    out_ref,                            # [B_PAD, CLS_PAD] f32
    x_scratch,                          # VMEM scratch: [T*B_PAD, D] f32
):
    Bq, Tq = q_ref.shape
    TBp, _ = x_scratch.shape
    Bp = TBp // Tq
    H = whr_ref.shape[0]

    lam = lam_ref[0]

    # ---- fused embedding gather + mixup lerp -> x_scratch (time-major, batch
    #      padded to Bp rows per timestep; pad rows stay zero) ----------------
    x_scratch[...] = jnp.zeros_like(x_scratch)
    for t in range(Tq):
        for b in range(Bq):
            tok_a = q_ref[b, t]                   # own token
            tok_b = q_ref[idx_ref[b], t]          # mixup partner's token
            row = (lam * emb_ref[pl.ds(tok_a, 1), :]
                   + (1.0 - lam) * emb_ref[pl.ds(tok_b, 1), :])   # [1, D] f32
            r0 = t * Bp + b
            x_scratch[r0:r0 + 1, :] = row

    # ---- hoisted GRU input projection: one matmul for ALL timesteps ---------
    x_bf = x_scratch[...].astype(jnp.bfloat16)
    gi_all = jnp.dot(x_bf, wih_ref[...],
                     preferred_element_type=jnp.float32) + bih_ref[...]   # [T*Bp, 3H]
    # split gates once (outside the recurrence); PyTorch order: r, z, n
    gi_r = gi_all[:, 0 * H:1 * H]
    gi_z = gi_all[:, 1 * H:2 * H]
    gi_n = gi_all[:, 2 * H:3 * H]

    w_hr = whr_ref[...]; w_hz = whz_ref[...]; w_hn = whn_ref[...]
    b_hr = bhr_ref[...]; b_hz = bhz_ref[...]; b_hn = bhn_ref[...]

    # ---- GRU recurrence, fully unrolled (T is tiny & static) ----------------
    h   = jnp.zeros((Bp, H), jnp.float32)
    acc = jnp.zeros((Bp, H), jnp.float32)     # running q_emb.sum(1)
    for t in range(Tq):
        h_bf = h.astype(jnp.bfloat16)
        gh_r = jnp.dot(h_bf, w_hr, preferred_element_type=jnp.float32) + b_hr
        gh_z = jnp.dot(h_bf, w_hz, preferred_element_type=jnp.float32) + b_hz
        gh_n = jnp.dot(h_bf, w_hn, preferred_element_type=jnp.float32) + b_hn
        lo = t * Bp                              # sublane-aligned (multiples of 8)
        r = jax.nn.sigmoid(gi_r[lo:lo + Bp] + gh_r)
        z = jax.nn.sigmoid(gi_z[lo:lo + Bp] + gh_z)
        n = jnp.tanh(gi_n[lo:lo + Bp] + r * gh_n)
        h = (1.0 - z) * n + z * h
        acc = acc + h

    # ---- classifier: Linear -> ReLU -> Linear (lane-dense padded tail) ------
    hid = jnp.dot(acc.astype(jnp.bfloat16), w1_ref[...],
                  preferred_element_type=jnp.float32) + b1_ref[...]
    hid = jnp.maximum(hid, 0.0)
    out_ref[...] = jnp.dot(hid.astype(jnp.bfloat16), w2_ref[...],
                           preferred_element_type=jnp.float32) + b2_ref[...]


def init_params(key):
    """Deterministic parameter init (synthetic; no checkpoint load)."""
    ks = jax.random.split(key, 8)
    s = 0.1
    return {
        "emb":  s * jax.random.normal(ks[0], (VOCAB, EMB_D), jnp.float32),
        "w_ih": s * jax.random.normal(ks[1], (EMB_D, 3 * HID), jnp.float32),
        "w_hh": s * jax.random.normal(ks[2], (HID, 3 * HID), jnp.float32),
        "b_ih": s * jax.random.normal(ks[3], (1, 3 * HID), jnp.float32),
        "b_hh": s * jax.random.normal(ks[4], (1, 3 * HID), jnp.float32),
        "w1":   s * jax.random.normal(ks[5], (HID, MLP_HID), jnp.float32),
        "b1":   jnp.zeros((1, MLP_HID), jnp.float32),
        "w2":   s * jax.random.normal(ks[6], (MLP_HID, N_CLS), jnp.float32),
        "b2":   jnp.zeros((1, N_CLS), jnp.float32),
    }


def _prepare_kernel_params(params):
    """Split GRU hidden weights per gate, pad classifier to 128 lanes, cast MXU operands to bf16."""
    H = HID
    w_hh = params["w_hh"]
    b_hh = params["b_hh"]
    kp = {
        "emb":  params["emb"].astype(jnp.float32),
        "w_ih": params["w_ih"].astype(jnp.bfloat16),
        "b_ih": params["b_ih"].astype(jnp.float32),
        "w_hr": w_hh[:, 0 * H:1 * H].astype(jnp.bfloat16),
        "w_hz": w_hh[:, 1 * H:2 * H].astype(jnp.bfloat16),
        "w_hn": w_hh[:, 2 * H:3 * H].astype(jnp.bfloat16),
        "b_hr": b_hh[:, 0 * H:1 * H].astype(jnp.float32),
        "b_hz": b_hh[:, 1 * H:2 * H].astype(jnp.float32),
        "b_hn": b_hh[:, 2 * H:3 * H].astype(jnp.float32),
        "w1": jnp.zeros((HID, MLP_PAD), jnp.float32)
                .at[:, :MLP_HID].set(params["w1"]).astype(jnp.bfloat16),
        "b1": jnp.zeros((1, MLP_PAD), jnp.float32).at[:, :MLP_HID].set(params["b1"]),
        "w2": jnp.zeros((MLP_PAD, CLS_PAD), jnp.float32)
                .at[:MLP_HID, :N_CLS].set(params["w2"]).astype(jnp.bfloat16),
        "b2": jnp.zeros((1, CLS_PAD), jnp.float32).at[:, :N_CLS].set(params["b2"]),
    }
    return kp


def question_classifier_forward(params, q, lam=None, index=None):
    """q: int32 [B, T] token ids. Returns logits [B, N_CLS] float32."""
    Bq, Tq = q.shape
    if lam is None:
        lam_arr = jnp.ones((1,), jnp.float32)              # identity mix
        index_arr = jnp.arange(Bq, dtype=jnp.int32)
    else:
        lam_arr = jnp.asarray(lam, jnp.float32).reshape((1,))
        index_arr = jnp.asarray(index, jnp.int32).reshape((Bq,))

    kp = _prepare_kernel_params(params)

    smem = pl.BlockSpec(memory_space=pltpu.MemorySpace.SMEM)
    vmem = pl.BlockSpec(memory_space=pltpu.MemorySpace.VMEM)

    out = pl.pallas_call(
        _question_classifier_kernel,
        out_shape=jax.ShapeDtypeStruct((B_PAD, CLS_PAD), jnp.float32),
        in_specs=[smem, smem, smem] + [vmem] * 13,
        out_specs=vmem,
        scratch_shapes=[pltpu.VMEM((Tq * B_PAD, EMB_D), jnp.float32)],
    )(
        q.astype(jnp.int32), index_arr, lam_arr,
        kp["emb"],
        kp["w_ih"], kp["b_ih"],
        kp["w_hr"], kp["w_hz"], kp["w_hn"],
        kp["b_hr"], kp["b_hz"], kp["b_hn"],
        kp["w1"], kp["b1"], kp["w2"], kp["b2"],
    )
    # drop the batch / class padding
    return out[:Bq, :N_CLS]


if __name__ == "__main__":
    key = jax.random.PRNGKey(0)
    pkey, qkey, lkey = jax.random.split(key, 3)

    params = init_params(pkey)
    q = jax.random.randint(qkey, (B, T), 0, VOCAB, dtype=jnp.int32)

    # plain forward (lam=None branch)
    logits = question_classifier_forward(params, q)
    logits = jax.block_until_ready(logits)
    assert logits.shape == (B, N_CLS)
    assert bool(jnp.all(jnp.isfinite(logits)))

    # mixup branch (lam != None) also exercised once
    lam = jnp.float32(0.7)
    index = jnp.array([1, 0], dtype=jnp.int32)
    logits_mix = question_classifier_forward(params, q, lam=lam, index=index)
    logits_mix = jax.block_until_ready(logits_mix)
    assert logits_mix.shape == (B, N_CLS)
    assert bool(jnp.all(jnp.isfinite(logits_mix)))

    print("KERNEL_OK")
</pallas_src>

<mosaic_0001>
module attributes {stable_mosaic.version = 11 : i64} {
  func.func @_question_classifier_kernel(%arg0: memref<2x8xi32, #tpu.memory_space<smem>>, %arg1: memref<2xi32, #tpu.memory_space<smem>>, %arg2: memref<1xf32, #tpu.memory_space<smem>>, %arg3: memref<64x32xf32, #tpu.memory_space<vmem>>, %arg4: memref<32x96xbf16, #tpu.memory_space<vmem>>, %arg5: memref<1x96xf32, #tpu.memory_space<vmem>>, %arg6: memref<32x32xbf16, #tpu.memory_space<vmem>>, %arg7: memref<32x32xbf16, #tpu.memory_space<vmem>>, %arg8: memref<32x32xbf16, #tpu.memory_space<vmem>>, %arg9: memref<1x32xf32, #tpu.memory_space<vmem>>, %arg10: memref<1x32xf32, #tpu.memory_space<vmem>>, %arg11: memref<1x32xf32, #tpu.memory_space<vmem>>, %arg12: memref<32x128xbf16, #tpu.memory_space<vmem>>, %arg13: memref<1x128xf32, #tpu.memory_space<vmem>>, %arg14: memref<128x128xbf16, #tpu.memory_space<vmem>>, %arg15: memref<1x128xf32, #tpu.memory_space<vmem>>, %arg16: memref<8x128xf32, #tpu.memory_space<vmem>>, %arg17: memref<64x32xf32, #tpu.memory_space<vmem>>) attributes {dimension_semantics = [], scalar_prefetch = 0 : i64, scratch_operands = 1 : i64, tpu.core_type = #tpu.core_type<tc>} {
    %c0 = arith.constant 0 : index
    %0 = memref.load %arg2[%c0] : memref<1xf32, #tpu.memory_space<smem>>
    %cst = arith.constant 0.000000e+00 : f32
    %1 = vector.broadcast %cst : f32 to vector<64x32xf32>
    %c0_0 = arith.constant 0 : index
    %c0_1 = arith.constant 0 : index
    %2 = vector.load %arg17[%c0_0, %c0_1] : memref<64x32xf32, #tpu.memory_space<vmem>>, vector<64x32xf32>
    tpu.vector_store %arg17[%c0_0, %c0_1], %1 {strides = array<i32>} : memref<64x32xf32, #tpu.memory_space<vmem>>, vector<64x32xf32>,
    %c0_2 = arith.constant 0 : index
    %c0_3 = arith.constant 0 : index
    %3 = memref.load %arg0[%c0_2, %c0_3] : memref<2x8xi32, #tpu.memory_space<smem>>
    %c0_4 = arith.constant 0 : index
    %4 = memref.load %arg1[%c0_4] : memref<2xi32, #tpu.memory_space<smem>>
    %5 = arith.index_cast %4 : i32 to index
    %c0_5 = arith.constant 0 : index
    %6 = memref.load %arg0[%5, %c0_5] : memref<2x8xi32, #tpu.memory_space<smem>>
    %7 = arith.index_cast %3 : i32 to index
    %c0_6 = arith.constant 0 : index
    %8 = vector.load %arg3[%7, %c0_6] : memref<64x32xf32, #tpu.memory_space<vmem>>, vector<1x32xf32>
    %9 = vector.broadcast %0 : f32 to vector<1x32xf32>
    %10 = arith.mulf %9, %8 : vector<1x32xf32>
    %cst_7 = arith.constant 1.000000e+00 : f32
    %11 = arith.subf %cst_7, %0 : f32
    %12 = arith.index_cast %6 : i32 to index
    %c0_8 = arith.constant 0 : index
    %13 = vector.load %arg3[%12, %c0_8] : memref<64x32xf32, #tpu.memory_space<vmem>>, vector<1x32xf32>
    %14 = vector.broadcast %11 : f32 to vector<1x32xf32>
    %15 = arith.mulf %14, %13 : vector<1x32xf32>
    %16 = arith.addf %10, %15 : vector<1x32xf32>
    %c0_9 = arith.constant 0 : index
    %c0_10 = arith.constant 0 : index
    %17 = vector.load %arg17[%c0_9, %c0_10] : memref<64x32xf32, #tpu.memory_space<vmem>>, vector<1x32xf32>
    tpu.vector_store %arg17[%c0_9, %c0_10], %16 {strides = array<i32>} : memref<64x32xf32, #tpu.memory_space<vmem>>, vector<1x32xf32>,
    %c1 = arith.constant 1 : index
    %c0_11 = arith.constant 0 : index
    %18 = memref.load %arg0[%c1, %c0_11] : memref<2x8xi32, #tpu.memory_space<smem>>
    %c1_12 = arith.constant 1 : index
    %19 = memref.load %arg1[%c1_12] : memref<2xi32, #tpu.memory_space<smem>>
    %20 = arith.index_cast %19 : i32 to index
    %c0_13 = arith.constant 0 : index
    %21 = memref.load %arg0[%20, %c0_13] : memref<2x8xi32, #tpu.memory_space<smem>>
    %22 = arith.index_cast %18 : i32 to index
    %c0_14 = arith.constant 0 : index
    %23 = vector.load %arg3[%22, %c0_14] : memref<64x32xf32, #tpu.memory_space<vmem>>, vector<1x32xf32>
    %24 = vector.broadcast %0 : f32 to vector<1x32xf32>
    %25 = arith.mulf %24, %23 : vector<1x32xf32>
    %cst_15 = arith.constant 1.000000e+00 : f32
    %26 = arith.subf %cst_15, %0 : f32
    %27 = arith.index_cast %21 : i32 to index
    %c0_16 = arith.constant 0 : index
    %28 = vector.load %arg3[%27, %c0_16] : memref<64x32xf32, #tpu.memory_space<vmem>>, vector<1x32xf32>
    %29 = vector.broadcast %26 : f32 to vector<1x32xf32>
    %30 = arith.mulf %29, %28 : vector<1x32xf32>
    %31 = arith.addf %25, %30 : vector<1x32xf32>
    %c1_17 = arith.constant 1 : index
    %c0_18 = arith.constant 0 : index
    %32 = vector.load %arg17[%c1_17, %c0_18] : memref<64x32xf32, #tpu.memory_space<vmem>>, vector<1x32xf32>
    tpu.vector_store %arg17[%c1_17, %c0_18], %31 {strides = array<i32>} : memref<64x32xf32, #tpu.memory_space<vmem>>, vector<1x32xf32>,
    %c0_19 = arith.constant 0 : index
    %c1_20 = arith.constant 1 : index
    %33 = memref.load %arg0[%c0_19, %c1_20] : memref<2x8xi32, #tpu.memory_space<smem>>
    %c0_21 = arith.constant 0 : index
    %34 = memref.load %arg1[%c0_21] : memref<2xi32, #tpu.memory_space<smem>>
    %35 = arith.index_cast %34 : i32 to index
    %c1_22 = arith.constant 1 : index
    %36 = memref.load %arg0[%35, %c1_22] : memref<2x8xi32, #tpu.memory_space<smem>>
    %37 = arith.index_cast %33 : i32 to index
    %c0_23 = arith.constant 0 : index
    %38 = vector.load %arg3[%37, %c0_23] : memref<64x32xf32, #tpu.memory_space<vmem>>, vector<1x32xf32>
    %39 = vector.broadcast %0 : f32 to vector<1x32xf32>
    %40 = arith.mulf %39, %38 : vector<1x32xf32>
    %cst_24 = arith.constant 1.000000e+00 : f32
    %41 = arith.subf %cst_24, %0 : f32
    %42 = arith.index_cast %36 : i32 to index
    %c0_25 = arith.constant 0 : index
    %43 = vector.load %arg3[%42, %c0_25] : memref<64x32xf32, #tpu.memory_space<vmem>>, vector<1x32xf32>
    %44 = vector.broadcast %41 : f32 to vector<1x32xf32>
    %45 = arith.mulf %44, %43 : vector<1x32xf32>
    %46 = arith.addf %40, %45 : vector<1x32xf32>
    %c8 = arith.constant 8 : index
    %c0_26 = arith.constant 0 : index
    %47 = vector.load %arg17[%c8, %c0_26] : memref<64x32xf32, #tpu.memory_space<vmem>>, vector<1x32xf32>
    tpu.vector_store %arg17[%c8, %c0_26], %46 {strides = array<i32>} : memref<64x32xf32, #tpu.memory_space<vmem>>, vector<1x32xf32>,
    %c1_27 = arith.constant 1 : index
    %c1_28 = arith.constant 1 : index
    %48 = memref.load %arg0[%c1_27, %c1_28] : memref<2x8xi32, #tpu.memory_space<smem>>
    %c1_29 = arith.constant 1 : index
    %49 = memref.load %arg1[%c1_29] : memref<2xi32, #tpu.memory_space<smem>>
    %50 = arith.index_cast %49 : i32 to index
    %c1_30 = arith.constant 1 : index
    %51 = memref.load %arg0[%50, %c1_30] : memref<2x8xi32, #tpu.memory_space<smem>>
    %52 = arith.index_cast %48 : i32 to index
    %c0_31 = arith.constant 0 : index
    %53 = vector.load %arg3[%52, %c0_31] : memref<64x32xf32, #tpu.memory_space<vmem>>, vector<1x32xf32>
    %54 = vector.broadcast %0 : f32 to vector<1x32xf32>
    %55 = arith.mulf %54, %53 : vector<1x32xf32>
    %cst_32 = arith.constant 1.000000e+00 : f32
    %56 = arith.subf %cst_32, %0 : f32
    %57 = arith.index_cast %51 : i32 to index
    %c0_33 = arith.constant 0 : index
    %58 = vector.load %arg3[%57, %c0_33] : memref<64x32xf32, #tpu.memory_space<vmem>>, vector<1x32xf32>
    %59 = vector.broadcast %56 : f32 to vector<1x32xf32>
    %60 = arith.mulf %59, %58 : vector<1x32xf32>
    %61 = arith.addf %55, %60 : vector<1x32xf32>
    %c9 = arith.constant 9 : index
    %c0_34 = arith.constant 0 : index
    %62 = vector.load %arg17[%c9, %c0_34] : memref<64x32xf32, #tpu.memory_space<vmem>>, vector<1x32xf32>
    tpu.vector_store %arg17[%c9, %c0_34], %61 {strides = array<i32>} : memref<64x32xf32, #tpu.memory_space<vmem>>, vector<1x32xf32>,
    %c0_35 = arith.constant 0 : index
    %c2 = arith.constant 2 : index
    %63 = memref.load %arg0[%c0_35, %c2] : memref<2x8xi32, #tpu.memory_space<smem>>
    %c0_36 = arith.constant 0 : index
    %64 = memref.load %arg1[%c0_36] : memref<2xi32, #tpu.memory_space<smem>>
    %65 = arith.index_cast %64 : i32 to index
    %c2_37 = arith.constant 2 : index
    %66 = memref.load %arg0[%65, %c2_37] : memref<2x8xi32, #tpu.memory_space<smem>>
    %67 = arith.index_cast %63 : i32 to index
    %c0_38 = arith.constant 0 : index
    %68 = vector.load %arg3[%67, %c0_38] : memref<64x32xf32, #tpu.memory_space<vmem>>, vector<1x32xf32>
    %69 = vector.broadcast %0 : f32 to vector<1x32xf32>
    %70 = arith.mulf %69, %68 : vector<1x32xf32>
    %cst_39 = arith.constant 1.000000e+00 : f32
    %71 = arith.subf %cst_39, %0 : f32
    %72 = arith.index_cast %66 : i32 to index
    %c0_40 = arith.constant 0 : index
    %73 = vector.load %arg3[%72, %c0_40] : memref<64x32xf32, #tpu.memory_space<vmem>>, vector<1x32xf32>
    %74 = vector.broadcast %71 : f32 to vector<1x32xf32>
    %75 = arith.mulf %74, %73 : vector<1x32xf32>
    %76 = arith.addf %70, %75 : vector<1x32xf32>
    %c16 = arith.constant 16 : index
    %c0_41 = arith.constant 0 : index
    %77 = vector.load %arg17[%c16, %c0_41] : memref<64x32xf32, #tpu.memory_space<vmem>>, vector<1x32xf32>
    tpu.vector_store %arg17[%c16, %c0_41], %76 {strides = array<i32>} : memref<64x32xf32, #tpu.memory_space<vmem>>, vector<1x32xf32>,
    %c1_42 = arith.constant 1 : index
    %c2_43 = arith.constant 2 : index
    %78 = memref.load %arg0[%c1_42, %c2_43] : memref<2x8xi32, #tpu.memory_space<smem>>
    %c1_44 = arith.constant 1 : index
    %79 = memref.load %arg1[%c1_44] : memref<2xi32, #tpu.memory_space<smem>>
    %80 = arith.index_cast %79 : i32 to index
    %c2_45 = arith.constant 2 : index
    %81 = memref.load %arg0[%80, %c2_45] : memref<2x8xi32, #tpu.memory_space<smem>>
    %82 = arith.index_cast %78 : i32 to index
    %c0_46 = arith.constant 0 : index
    %83 = vector.load %arg3[%82, %c0_46] : memref<64x32xf32, #tpu.memory_space<vmem>>, vector<1x32xf32>
    %84 = vector.broadcast %0 : f32 to vector<1x32xf32>
    %85 = arith.mulf %84, %83 : vector<1x32xf32>
    %cst_47 = arith.constant 1.000000e+00 : f32
    %86 = arith.subf %cst_47, %0 : f32
    %87 = arith.index_cast %81 : i32 to index
    %c0_48 = arith.constant 0 : index
    %88 = vector.load %arg3[%87, %c0_48] : memref<64x32xf32, #tpu.memory_space<vmem>>, vector<1x32xf32>
    %89 = vector.broadcast %86 : f32 to vector<1x32xf32>
    %90 = arith.mulf %89, %88 : vector<1x32xf32>
    %91 = arith.addf %85, %90 : vector<1x32xf32>
    %c17 = arith.constant 17 : index
    %c0_49 = arith.constant 0 : index
    %92 = vector.load %arg17[%c17, %c0_49] : memref<64x32xf32, #tpu.memory_space<vmem>>, vector<1x32xf32>
    tpu.vector_store %arg17[%c17, %c0_49], %91 {strides = array<i32>} : memref<64x32xf32, #tpu.memory_space<vmem>>, vector<1x32xf32>,
    %c0_50 = arith.constant 0 : index
    %c3 = arith.constant 3 : index
    %93 = memref.load %arg0[%c0_50, %c3] : memref<2x8xi32, #tpu.memory_space<smem>>
    %c0_51 = arith.constant 0 : index
    %94 = memref.load %arg1[%c0_51] : memref<2xi32, #tpu.memory_space<smem>>
    %95 = arith.index_cast %94 : i32 to index
    %c3_52 = arith.constant 3 : index
    %96 = memref.load %arg0[%95, %c3_52] : memref<2x8xi32, #tpu.memory_space<smem>>
    %97 = arith.index_cast %93 : i32 to index
    %c0_53 = arith.constant 0 : index
    %98 = vector.load %arg3[%97, %c0_53] : memref<64x32xf32, #tpu.memory_space<vmem>>, vector<1x32xf32>
    %99 = vector.broadcast %0 : f32 to vector<1x32xf32>
    %100 = arith.mulf %99, %98 : vector<1x32xf32>
    %cst_54 = arith.constant 1.000000e+00 : f32
    %101 = arith.subf %cst_54, %0 : f32
    %102 = arith.index_cast %96 : i32 to index
    %c0_55 = arith.constant 0 : index
    %103 = vector.load %arg3[%102, %c0_55] : memref<64x32xf32, #tpu.memory_space<vmem>>, vector<1x32xf32>
    %104 = vector.broadcast %101 : f32 to vector<1x32xf32>
    %105 = arith.mulf %104, %103 : vector<1x32xf32>
    %106 = arith.addf %100, %105 : vector<1x32xf32>
    %c24 = arith.constant 24 : index
    %c0_56 = arith.constant 0 : index
    %107 = vector.load %arg17[%c24, %c0_56] : memref<64x32xf32, #tpu.memory_space<vmem>>, vector<1x32xf32>
    tpu.vector_store %arg17[%c24, %c0_56], %106 {strides = array<i32>} : memref<64x32xf32, #tpu.memory_space<vmem>>, vector<1x32xf32>,
    %c1_57 = arith.constant 1 : index
    %c3_58 = arith.constant 3 : index
    %108 = memref.load %arg0[%c1_57, %c3_58] : memref<2x8xi32, #tpu.memory_space<smem>>
    %c1_59 = arith.constant 1 : index
    %109 = memref.load %arg1[%c1_59] : memref<2xi32, #tpu.memory_space<smem>>
    %110 = arith.index_cast %109 : i32 to index
    %c3_60 = arith.constant 3 : index
    %111 = memref.load %arg0[%110, %c3_60] : memref<2x8xi32, #tpu.memory_space<smem>>
    %112 = arith.index_cast %108 : i32 to index
    %c0_61 = arith.constant 0 : index
    %113 = vector.load %arg3[%112, %c0_61] : memref<64x32xf32, #tpu.memory_space<vmem>>, vector<1x32xf32>
    %114 = vector.broadcast %0 : f32 to vector<1x32xf32>
    %115 = arith.mulf %114, %113 : vector<1x32xf32>
    %cst_62 = arith.constant 1.000000e+00 : f32
    %116 = arith.subf %cst_62, %0 : f32
    %117 = arith.index_cast %111 : i32 to index
    %c0_63 = arith.constant 0 : index
    %118 = vector.load %arg3[%117, %c0_63] : memref<64x32xf32, #tpu.memory_space<vmem>>, vector<1x32xf32>
    %119 = vector.broadcast %116 : f32 to vector<1x32xf32>
    %120 = arith.mulf %119, %118 : vector<1x32xf32>
    %121 = arith.addf %115, %120 : vector<1x32xf32>
    %c25 = arith.constant 25 : index
    %c0_64 = arith.constant 0 : index
    %122 = vector.load %arg17[%c25, %c0_64] : memref<64x32xf32, #tpu.memory_space<vmem>>, vector<1x32xf32>
    tpu.vector_store %arg17[%c25, %c0_64], %121 {strides = array<i32>} : memref<64x32xf32, #tpu.memory_space<vmem>>, vector<1x32xf32>,
    %c0_65 = arith.constant 0 : index
    %c4 = arith.constant 4 : index
    %123 = memref.load %arg0[%c0_65, %c4] : memref<2x8xi32, #tpu.memory_space<smem>>
    %c0_66 = arith.constant 0 : index
    %124 = memref.load %arg1[%c0_66] : memref<2xi32, #tpu.memory_space<smem>>
    %125 = arith.index_cast %124 : i32 to index
    %c4_67 = arith.constant 4 : index
    %126 = memref.load %arg0[%125, %c4_67] : memref<2x8xi32, #tpu.memory_space<smem>>
    %127 = arith.index_cast %123 : i32 to index
    %c0_68 = arith.constant 0 : index
    %128 = vector.load %arg3[%127, %c0_68] : memref<64x32xf32, #tpu.memory_space<vmem>>, vector<1x32xf32>
    %129 = vector.broadcast %0 : f32 to vector<1x32xf32>
    %130 = arith.mulf %129, %128 : vector<1x32xf32>
    %cst_69 = arith.constant 1.000000e+00 : f32
    %131 = arith.subf %cst_69, %0 : f32
    %132 = arith.index_cast %126 : i32 to index
    %c0_70 = arith.constant 0 : index
    %133 = vector.load %arg3[%132, %c0_70] : memref<64x32xf32, #tpu.memory_space<vmem>>, vector<1x32xf32>
    %134 = vector.broadcast %131 : f32 to vector<1x32xf32>
    %135 = arith.mulf %134, %133 : vector<1x32xf32>
    %136 = arith.addf %130, %135 : vector<1x32xf32>
    %c32 = arith.constant 32 : index
    %c0_71 = arith.constant 0 : index
    %137 = vector.load %arg17[%c32, %c0_71] : memref<64x32xf32, #tpu.memory_space<vmem>>, vector<1x32xf32>
    tpu.vector_store %arg17[%c32, %c0_71], %136 {strides = array<i32>} : memref<64x32xf32, #tpu.memory_space<vmem>>, vector<1x32xf32>,
    %c1_72 = arith.constant 1 : index
    %c4_73 = arith.constant 4 : index
    %138 = memref.load %arg0[%c1_72, %c4_73] : memref<2x8xi32, #tpu.memory_space<smem>>
    %c1_74 = arith.constant 1 : index
    %139 = memref.load %arg1[%c1_74] : memref<2xi32, #tpu.memory_space<smem>>
    %140 = arith.index_cast %139 : i32 to index
    %c4_75 = arith.constant 4 : index
    %141 = memref.load %arg0[%140, %c4_75] : memref<2x8xi32, #tpu.memory_space<smem>>
    %142 = arith.index_cast %138 : i32 to index
    %c0_76 = arith.constant 0 : index
    %143 = vector.load %arg3[%142, %c0_76] : memref<64x32xf32, #tpu.memory_space<vmem>>, vector<1x32xf32>
    %144 = vector.broadcast %0 : f32 to vector<1x32xf32>
    %145 = arith.mulf %144, %143 : vector<1x32xf32>
    %cst_77 = arith.constant 1.000000e+00 : f32
    %146 = arith.subf %cst_77, %0 : f32
    %147 = arith.index_cast %141 : i32 to index
    %c0_78 = arith.constant 0 : index
    %148 = vector.load %arg3[%147, %c0_78] : memref<64x32xf32, #tpu.memory_space<vmem>>, vector<1x32xf32>
    %149 = vector.broadcast %146 : f32 to vector<1x32xf32>
    %150 = arith.mulf %149, %148 : vector<1x32xf32>
    %151 = arith.addf %145, %150 : vector<1x32xf32>
    %c33 = arith.constant 33 : index
    %c0_79 = arith.constant 0 : index
    %152 = vector.load %arg17[%c33, %c0_79] : memref<64x32xf32, #tpu.memory_space<vmem>>, vector<1x32xf32>
    tpu.vector_store %arg17[%c33, %c0_79], %151 {strides = array<i32>} : memref<64x32xf32, #tpu.memory_space<vmem>>, vector<1x32xf32>,
    %c0_80 = arith.constant 0 : index
    %c5 = arith.constant 5 : index
    %153 = memref.load %arg0[%c0_80, %c5] : memref<2x8xi32, #tpu.memory_space<smem>>
    %c0_81 = arith.constant 0 : index
    %154 = memref.load %arg1[%c0_81] : memref<2xi32, #tpu.memory_space<smem>>
    %155 = arith.index_cast %154 : i32 to index
    %c5_82 = arith.constant 5 : index
    %156 = memref.load %arg0[%155, %c5_82] : memref<2x8xi32, #tpu.memory_space<smem>>
    %157 = arith.index_cast %153 : i32 to index
    %c0_83 = arith.constant 0 : index
    %158 = vector.load %arg3[%157, %c0_83] : memref<64x32xf32, #tpu.memory_space<vmem>>, vector<1x32xf32>
    %159 = vector.broadcast %0 : f32 to vector<1x32xf32>
    %160 = arith.mulf %159, %158 : vector<1x32xf32>
    %cst_84 = arith.constant 1.000000e+00 : f32
    %161 = arith.subf %cst_84, %0 : f32
    %162 = arith.index_cast %156 : i32 to index
    %c0_85 = arith.constant 0 : index
    %163 = vector.load %arg3[%162, %c0_85] : memref<64x32xf32, #tpu.memory_space<vmem>>, vector<1x32xf32>
    %164 = vector.broadcast %161 : f32 to vector<1x32xf32>
    %165 = arith.mulf %164, %163 : vector<1x32xf32>
    %166 = arith.addf %160, %165 : vector<1x32xf32>
    %c40 = arith.constant 40 : index
    %c0_86 = arith.constant 0 : index
    %167 = vector.load %arg17[%c40, %c0_86] : memref<64x32xf32, #tpu.memory_space<vmem>>, vector<1x32xf32>
    tpu.vector_store %arg17[%c40, %c0_86], %166 {strides = array<i32>} : memref<64x32xf32, #tpu.memory_space<vmem>>, vector<1x32xf32>,
    %c1_87 = arith.constant 1 : index
    %c5_88 = arith.constant 5 : index
    %168 = memref.load %arg0[%c1_87, %c5_88] : memref<2x8xi32, #tpu.memory_space<smem>>
    %c1_89 = arith.constant 1 : index
    %169 = memref.load %arg1[%c1_89] : memref<2xi32, #tpu.memory_space<smem>>
    %170 = arith.index_cast %169 : i32 to index
    %c5_90 = arith.constant 5 : index
    %171 = memref.load %arg0[%170, %c5_90] : memref<2x8xi32, #tpu.memory_space<smem>>
    %172 = arith.index_cast %168 : i32 to index
    %c0_91 = arith.constant 0 : index
    %173 = vector.load %arg3[%172, %c0_91] : memref<64x32xf32, #tpu.memory_space<vmem>>, vector<1x32xf32>
    %174 = vector.broadcast %0 : f32 to vector<1x32xf32>
    %175 = arith.mulf %174, %173 : vector<1x32xf32>
    %cst_92 = arith.constant 1.000000e+00 : f32
    %176 = arith.subf %cst_92, %0 : f32
    %177 = arith.index_cast %171 : i32 to index
    %c0_93 = arith.constant 0 : index
    %178 = vector.load %arg3[%177, %c0_93] : memref<64x32xf32, #tpu.memory_space<vmem>>, vector<1x32xf32>
    %179 = vector.broadcast %176 : f32 to vector<1x32xf32>
    %180 = arith.mulf %179, %178 : vector<1x32xf32>
    %181 = arith.addf %175, %180 : vector<1x32xf32>
    %c41 = arith.constant 41 : index
    %c0_94 = arith.constant 0 : index
    %182 = vector.load %arg17[%c41, %c0_94] : memref<64x32xf32, #tpu.memory_space<vmem>>, vector<1x32xf32>
    tpu.vector_store %arg17[%c41, %c0_94], %181 {strides = array<i32>} : memref<64x32xf32, #tpu.memory_space<vmem>>, vector<1x32xf32>,
    %c0_95 = arith.constant 0 : index
    %c6 = arith.constant 6 : index
    %183 = memref.load %arg0[%c0_95, %c6] : memref<2x8xi32, #tpu.memory_space<smem>>
    %c0_96 = arith.constant 0 : index
    %184 = memref.load %arg1[%c0_96] : memref<2xi32, #tpu.memory_space<smem>>
    %185 = arith.index_cast %184 : i32 to index
    %c6_97 = arith.constant 6 : index
    %186 = memref.load %arg0[%185, %c6_97] : memref<2x8xi32, #tpu.memory_space<smem>>
    %187 = arith.index_cast %183 : i32 to index
    %c0_98 = arith.constant 0 : index
    %188 = vector.load %arg3[%187, %c0_98] : memref<64x32xf32, #tpu.memory_space<vmem>>, vector<1x32xf32>
    %189 = vector.broadcast %0 : f32 to vector<1x32xf32>
    %190 = arith.mulf %189, %188 : vector<1x32xf32>
    %cst_99 = arith.constant 1.000000e+00 : f32
    %191 = arith.subf %cst_99, %0 : f32
    %192 = arith.index_cast %186 : i32 to index
    %c0_100 = arith.constant 0 : index
    %193 = vector.load %arg3[%192, %c0_100] : memref<64x32xf32, #tpu.memory_space<vmem>>, vector<1x32xf32>
    %194 = vector.broadcast %191 : f32 to vector<1x32xf32>
    %195 = arith.mulf %194, %193 : vector<1x32xf32>
    %196 = arith.addf %190, %195 : vector<1x32xf32>
    %c48 = arith.constant 48 : index
    %c0_101 = arith.constant 0 : index
    %197 = vector.load %arg17[%c48, %c0_101] : memref<64x32xf32, #tpu.memory_space<vmem>>, vector<1x32xf32>
    tpu.vector_store %arg17[%c48, %c0_101], %196 {strides = array<i32>} : memref<64x32xf32, #tpu.memory_space<vmem>>, vector<1x32xf32>,
    %c1_102 = arith.constant 1 : index
    %c6_103 = arith.constant 6 : index
    %198 = memref.load %arg0[%c1_102, %c6_103] : memref<2x8xi32, #tpu.memory_space<smem>>
    %c1_104 = arith.constant 1 : index
    %199 = memref.load %arg1[%c1_104] : memref<2xi32, #tpu.memory_space<smem>>
    %200 = arith.index_cast %199 : i32 to index
    %c6_105 = arith.constant 6 : index
    %201 = memref.load %arg0[%200, %c6_105] : memref<2x8xi32, #tpu.memory_space<smem>>
    %202 = arith.index_cast %198 : i32 to index
    %c0_106 = arith.constant 0 : index
    %203 = vector.load %arg3[%202, %c0_106] : memref<64x32xf32, #tpu.memory_space<vmem>>, vector<1x32xf32>
    %204 = vector.broadcast %0 : f32 to vector<1x32xf32>
    %205 = arith.mulf %204, %203 : vector<1x32xf32>
    %cst_107 = arith.constant 1.000000e+00 : f32
    %206 = arith.subf %cst_107, %0 : f32
    %207 = arith.index_cast %201 : i32 to index
    %c0_108 = arith.constant 0 : index
    %208 = vector.load %arg3[%207, %c0_108] : memref<64x32xf32, #tpu.memory_space<vmem>>, vector<1x32xf32>
    %209 = vector.broadcast %206 : f32 to vector<1x32xf32>
    %210 = arith.mulf %209, %208 : vector<1x32xf32>
    %211 = arith.addf %205, %210 : vector<1x32xf32>
    %c49 = arith.constant 49 : index
    %c0_109 = arith.constant 0 : index
    %212 = vector.load %arg17[%c49, %c0_109] : memref<64x32xf32, #tpu.memory_space<vmem>>, vector<1x32xf32>
    tpu.vector_store %arg17[%c49, %c0_109], %211 {strides = array<i32>} : memref<64x32xf32, #tpu.memory_space<vmem>>, vector<1x32xf32>,
    %c0_110 = arith.constant 0 : index
    %c7 = arith.constant 7 : index
    %213 = memref.load %arg0[%c0_110, %c7] : memref<2x8xi32, #tpu.memory_space<smem>>
    %c0_111 = arith.constant 0 : index
    %214 = memref.load %arg1[%c0_111] : memref<2xi32, #tpu.memory_space<smem>>
    %215 = arith.index_cast %214 : i32 to index
    %c7_112 = arith.constant 7 : index
    %216 = memref.load %arg0[%215, %c7_112] : memref<2x8xi32, #tpu.memory_space<smem>>
    %217 = arith.index_cast %213 : i32 to index
    %c0_113 = arith.constant 0 : index
    %218 = vector.load %arg3[%217, %c0_113] : memref<64x32xf32, #tpu.memory_space<vmem>>, vector<1x32xf32>
    %219 = vector.broadcast %0 : f32 to vector<1x32xf32>
    %220 = arith.mulf %219, %218 : vector<1x32xf32>
    %cst_114 = arith.constant 1.000000e+00 : f32
    %221 = arith.subf %cst_114, %0 : f32
    %222 = arith.index_cast %216 : i32 to index
    %c0_115 = arith.constant 0 : index
    %223 = vector.load %arg3[%222, %c0_115] : memref<64x32xf32, #tpu.memory_space<vmem>>, vector<1x32xf32>
    %224 = vector.broadcast %221 : f32 to vector<1x32xf32>
    %225 = arith.mulf %224, %223 : vector<1x32xf32>
    %226 = arith.addf %220, %225 : vector<1x32xf32>
    %c56 = arith.constant 56 : index
    %c0_116 = arith.constant 0 : index
    %227 = vector.load %arg17[%c56, %c0_116] : memref<64x32xf32, #tpu.memory_space<vmem>>, vector<1x32xf32>
    tpu.vector_store %arg17[%c56, %c0_116], %226 {strides = array<i32>} : memref<64x32xf32, #tpu.memory_space<vmem>>, vector<1x32xf32>,
    %c1_117 = arith.constant 1 : index
    %c7_118 = arith.constant 7 : index
    %228 = memref.load %arg0[%c1_117, %c7_118] : memref<2x8xi32, #tpu.memory_space<smem>>
    %c1_119 = arith.constant 1 : index
    %229 = memref.load %arg1[%c1_119] : memref<2xi32, #tpu.memory_space<smem>>
    %230 = arith.index_cast %229 : i32 to index
    %c7_120 = arith.constant 7 : index
    %231 = memref.load %arg0[%230, %c7_120] : memref<2x8xi32, #tpu.memory_space<smem>>
    %232 = arith.index_cast %228 : i32 to index
    %c0_121 = arith.constant 0 : index
    %233 = vector.load %arg3[%232, %c0_121] : memref<64x32xf32, #tpu.memory_space<vmem>>, vector<1x32xf32>
    %234 = vector.broadcast %0 : f32 to vector<1x32xf32>
    %235 = arith.mulf %234, %233 : vector<1x32xf32>
    %cst_122 = arith.constant 1.000000e+00 : f32
    %236 = arith.subf %cst_122, %0 : f32
    %237 = arith.index_cast %231 : i32 to index
    %c0_123 = arith.constant 0 : index
    %238 = vector.load %arg3[%237, %c0_123] : memref<64x32xf32, #tpu.memory_space<vmem>>, vector<1x32xf32>
    %239 = vector.broadcast %236 : f32 to vector<1x32xf32>
    %240 = arith.mulf %239, %238 : vector<1x32xf32>
    %241 = arith.addf %235, %240 : vector<1x32xf32>
    %c57 = arith.constant 57 : index
    %c0_124 = arith.constant 0 : index
    %242 = vector.load %arg17[%c57, %c0_124] : memref<64x32xf32, #tpu.memory_space<vmem>>, vector<1x32xf32>
    tpu.vector_store %arg17[%c57, %c0_124], %241 {strides = array<i32>} : memref<64x32xf32, #tpu.memory_space<vmem>>, vector<1x32xf32>,
    %c0_125 = arith.constant 0 : index
    %c0_126 = arith.constant 0 : index
    %243 = vector.load %arg17[%c0_125, %c0_126] : memref<64x32xf32, #tpu.memory_space<vmem>>, vector<64x32xf32>
    %244 = arith.truncf %243 : vector<64x32xf32> to vector<64x32xbf16>
    %c0_127 = arith.constant 0 : index
    %c0_128 = arith.constant 0 : index
    %245 = vector.load %arg4[%c0_127, %c0_128] : memref<32x96xbf16, #tpu.memory_space<vmem>>, vector<32x96xbf16>
    %cst_129 = arith.constant dense<0.000000e+00> : vector<64x96xf32>
    %246 = tpu.matmul %244, %245, %cst_129 {dimension_numbers = #tpu.dot_dimension_numbers<[1], [0], [0], [1], [0, 0, 1, 1], [], []>} : vector<64x32xbf16>, vector<32x96xbf16>, vector<64x96xf32> -> vector<64x96xf32>
    %c0_130 = arith.constant 0 : index
    %c0_131 = arith.constant 0 : index
    %247 = vector.load %arg5[%c0_130, %c0_131] : memref<1x96xf32, #tpu.memory_space<vmem>>, vector<1x96xf32>
    %248 = vector.broadcast %247 : vector<1x96xf32> to vector<64x96xf32>
    %249 = arith.addf %246, %248 : vector<64x96xf32>
    %250 = vector.extract_strided_slice %249 {offsets = [0, 0], sizes = [64, 32], strides = [1, 1]} : vector<64x96xf32> to vector<64x32xf32>
    %251 = vector.extract_strided_slice %249 {offsets = [0, 32], sizes = [64, 32], strides = [1, 1]} : vector<64x96xf32> to vector<64x32xf32>
    %252 = vector.extract_strided_slice %249 {offsets = [0, 64], sizes = [64, 32], strides = [1, 1]} : vector<64x96xf32> to vector<64x32xf32>
    %c0_132 = arith.constant 0 : index
    %c0_133 = arith.constant 0 : index
    %253 = vector.load %arg6[%c0_132, %c0_133] : memref<32x32xbf16, #tpu.memory_space<vmem>>, vector<32x32xbf16>
    %c0_134 = arith.constant 0 : index
    %c0_135 = arith.constant 0 : index
    %254 = vector.load %arg7[%c0_134, %c0_135] : memref<32x32xbf16, #tpu.memory_space<vmem>>, vector<32x32xbf16>
    %c0_136 = arith.constant 0 : index
    %c0_137 = arith.constant 0 : index
    %255 = vector.load %arg8[%c0_136, %c0_137] : memref<32x32xbf16, #tpu.memory_space<vmem>>, vector<32x32xbf16>
    %c0_138 = arith.constant 0 : index
    %c0_139 = arith.constant 0 : index
    %256 = vector.load %arg9[%c0_138, %c0_139] : memref<1x32xf32, #tpu.memory_space<vmem>>, vector<1x32xf32>
    %c0_140 = arith.constant 0 : index
    %c0_141 = arith.constant 0 : index
    %257 = vector.load %arg10[%c0_140, %c0_141] : memref<1x32xf32, #tpu.memory_space<vmem>>, vector<1x32xf32>
    %c0_142 = arith.constant 0 : index
    %c0_143 = arith.constant 0 : index
    %258 = vector.load %arg11[%c0_142, %c0_143] : memref<1x32xf32, #tpu.memory_space<vmem>>, vector<1x32xf32>
    %cst_144 = arith.constant 0.000000e+00 : f32
    %259 = vector.broadcast %cst_144 : f32 to vector<8x32xf32>
    %cst_145 = arith.constant 0.000000e+00 : f32
    %260 = vector.broadcast %cst_145 : f32 to vector<8x32xf32>
    %261 = arith.truncf %259 : vector<8x32xf32> to vector<8x32xbf16>
    %cst_146 = arith.constant dense<0.000000e+00> : vector<8x32xf32>
    %262 = tpu.matmul %261, %253, %cst_146 {dimension_numbers = #tpu.dot_dimension_numbers<[1], [0], [0], [1], [0, 0, 1, 1], [], []>} : vector<8x32xbf16>, vector<32x32xbf16>, vector<8x32xf32> -> vector<8x32xf32>
    %263 = vector.broadcast %256 : vector<1x32xf32> to vector<8x32xf32>
    %264 = arith.addf %262, %263 : vector<8x32xf32>
    %cst_147 = arith.constant dense<0.000000e+00> : vector<8x32xf32>
    %265 = tpu.matmul %261, %254, %cst_147 {dimension_numbers = #tpu.dot_dimension_numbers<[1], [0], [0], [1], [0, 0, 1, 1], [], []>} : vector<8x32xbf16>, vector<32x32xbf16>, vector<8x32xf32> -> vector<8x32xf32>
    %266 = vector.broadcast %257 : vector<1x32xf32> to vector<8x32xf32>
    %267 = arith.addf %265, %266 : vector<8x32xf32>
    %cst_148 = arith.constant dense<0.000000e+00> : vector<8x32xf32>
    %268 = tpu.matmul %261, %255, %cst_148 {dimension_numbers = #tpu.dot_dimension_numbers<[1], [0], [0], [1], [0, 0, 1, 1], [], []>} : vector<8x32xbf16>, vector<32x32xbf16>, vector<8x32xf32> -> vector<8x32xf32>
    %269 = vector.broadcast %258 : vector<1x32xf32> to vector<8x32xf32>
    %270 = arith.addf %268, %269 : vector<8x32xf32>
    %271 = vector.extract_strided_slice %250 {offsets = [0, 0], sizes = [8, 32], strides = [1, 1]} : vector<64x32xf32> to vector<8x32xf32>
    %272 = arith.addf %271, %264 : vector<8x32xf32>
    %273 = arith.negf %272 : vector<8x32xf32>
    %274 = math.exp %273 : vector<8x32xf32>
    %cst_149 = arith.constant 1.000000e+00 : f32
    %275 = vector.broadcast %cst_149 : f32 to vector<8x32xf32>
    %276 = arith.addf %275, %274 : vector<8x32xf32>
    %277 = arith.divf %275, %276 : vector<8x32xf32>
    %278 = vector.extract_strided_slice %251 {offsets = [0, 0], sizes = [8, 32], strides = [1, 1]} : vector<64x32xf32> to vector<8x32xf32>
    %279 = arith.addf %278, %267 : vector<8x32xf32>
    %280 = arith.negf %279 : vector<8x32xf32>
    %281 = math.exp %280 : vector<8x32xf32>
    %cst_150 = arith.constant 1.000000e+00 : f32
    %282 = vector.broadcast %cst_150 : f32 to vector<8x32xf32>
    %283 = arith.addf %282, %281 : vector<8x32xf32>
    %284 = arith.divf %282, %283 : vector<8x32xf32>
    %285 = vector.extract_strided_slice %252 {offsets = [0, 0], sizes = [8, 32], strides = [1, 1]} : vector<64x32xf32> to vector<8x32xf32>
    %286 = arith.mulf %277, %270 : vector<8x32xf32>
    %287 = arith.addf %285, %286 : vector<8x32xf32>
    %288 = math.tanh %287 : vector<8x32xf32>
    %cst_151 = arith.constant 1.000000e+00 : f32
    %289 = vector.broadcast %cst_151 : f32 to vector<8x32xf32>
    %290 = arith.subf %289, %284 : vector<8x32xf32>
    %291 = arith.mulf %290, %288 : vector<8x32xf32>
    %292 = arith.mulf %284, %259 : vector<8x32xf32>
    %293 = arith.addf %291, %292 : vector<8x32xf32>
    %294 = arith.addf %260, %293 : vector<8x32xf32>
    %295 = arith.truncf %293 : vector<8x32xf32> to vector<8x32xbf16>
    %cst_152 = arith.constant dense<0.000000e+00> : vector<8x32xf32>
    %296 = tpu.matmul %295, %253, %cst_152 {dimension_numbers = #tpu.dot_dimension_numbers<[1], [0], [0], [1], [0, 0, 1, 1], [], []>} : vector<8x32xbf16>, vector<32x32xbf16>, vector<8x32xf32> -> vector<8x32xf32>
    %297 = vector.broadcast %256 : vector<1x32xf32> to vector<8x32xf32>
    %298 = arith.addf %296, %297 : vector<8x32xf32>
    %cst_153 = arith.constant dense<0.000000e+00> : vector<8x32xf32>
    %299 = tpu.matmul %295, %254, %cst_153 {dimension_numbers = #tpu.dot_dimension_numbers<[1], [0], [0], [1], [0, 0, 1, 1], [], []>} : vector<8x32xbf16>, vector<32x32xbf16>, vector<8x32xf32> -> vector<8x32xf32>
    %300 = vector.broadcast %257 : vector<1x32xf32> to vector<8x32xf32>
    %301 = arith.addf %299, %300 : vector<8x32xf32>
    %cst_154 = arith.constant dense<0.000000e+00> : vector<8x32xf32>
    %302 = tpu.matmul %295, %255, %cst_154 {dimension_numbers = #tpu.dot_dimension_numbers<[1], [0], [0], [1], [0, 0, 1, 1], [], []>} : vector<8x32xbf16>, vector<32x32xbf16>, vector<8x32xf32> -> vector<8x32xf32>
    %303 = vector.broadcast %258 : vector<1x32xf32> to vector<8x32xf32>
    %304 = arith.addf %302, %303 : vector<8x32xf32>
    %305 = vector.extract_strided_slice %250 {offsets = [8, 0], sizes = [8, 32], strides = [1, 1]} : vector<64x32xf32> to vector<8x32xf32>
    %306 = arith.addf %305, %298 : vector<8x32xf32>
    %307 = arith.negf %306 : vector<8x32xf32>
    %308 = math.exp %307 : vector<8x32xf32>
    %cst_155 = arith.constant 1.000000e+00 : f32
    %309 = vector.broadcast %cst_155 : f32 to vector<8x32xf32>
    %310 = arith.addf %309, %308 : vector<8x32xf32>
    %311 = arith.divf %309, %310 : vector<8x32xf32>
    %312 = vector.extract_strided_slice %251 {offsets = [8, 0], sizes = [8, 32], strides = [1, 1]} : vector<64x32xf32> to vector<8x32xf32>
    %313 = arith.addf %312, %301 : vector<8x32xf32>
    %314 = arith.negf %313 : vector<8x32xf32>
    %315 = math.exp %314 : vector<8x32xf32>
    %cst_156 = arith.constant 1.000000e+00 : f32
    %316 = vector.broadcast %cst_156 : f32 to vector<8x32xf32>
    %317 = arith.addf %316, %315 : vector<8x32xf32>
    %318 = arith.divf %316, %317 : vector<8x32xf32>
    %319 = vector.extract_strided_slice %252 {offsets = [8, 0], sizes = [8, 32], strides = [1, 1]} : vector<64x32xf32> to vector<8x32xf32>
    %320 = arith.mulf %311, %304 : vector<8x32xf32>
    %321 = arith.addf %319, %320 : vector<8x32xf32>
    %322 = math.tanh %321 : vector<8x32xf32>
    %cst_157 = arith.constant 1.000000e+00 : f32
    %323 = vector.broadcast %cst_157 : f32 to vector<8x32xf32>
    %324 = arith.subf %323, %318 : vector<8x32xf32>
    %325 = arith.mulf %324, %322 : vector<8x32xf32>
    %326 = arith.mulf %318, %293 : vector<8x32xf32>
    %327 = arith.addf %325, %326 : vector<8x32xf32>
    %328 = arith.addf %294, %327 : vector<8x32xf32>
    %329 = arith.truncf %327 : vector<8x32xf32> to vector<8x32xbf16>
    %cst_158 = arith.constant dense<0.000000e+00> : vector<8x32xf32>
    %330 = tpu.matmul %329, %253, %cst_158 {dimension_numbers = #tpu.dot_dimension_numbers<[1], [0], [0], [1], [0, 0, 1, 1], [], []>} : vector<8x32xbf16>, vector<32x32xbf16>, vector<8x32xf32> -> vector<8x32xf32>
    %331 = vector.broadcast %256 : vector<1x32xf32> to vector<8x32xf32>
    %332 = arith.addf %330, %331 : vector<8x32xf32>
    %cst_159 = arith.constant dense<0.000000e+00> : vector<8x32xf32>
    %333 = tpu.matmul %329, %254, %cst_159 {dimension_numbers = #tpu.dot_dimension_numbers<[1], [0], [0], [1], [0, 0, 1, 1], [], []>} : vector<8x32xbf16>, vector<32x32xbf16>, vector<8x32xf32> -> vector<8x32xf32>
    %334 = vector.broadcast %257 : vector<1x32xf32> to vector<8x32xf32>
    %335 = arith.addf %333, %334 : vector<8x32xf32>
    %cst_160 = arith.constant dense<0.000000e+00> : vector<8x32xf32>
    %336 = tpu.matmul %329, %255, %cst_160 {dimension_numbers = #tpu.dot_dimension_numbers<[1], [0], [0], [1], [0, 0, 1, 1], [], []>} : vector<8x32xbf16>, vector<32x32xbf16>, vector<8x32xf32> -> vector<8x32xf32>
    %337 = vector.broadcast %258 : vector<1x32xf32> to vector<8x32xf32>
    %338 = arith.addf %336, %337 : vector<8x32xf32>
    %339 = vector.extract_strided_slice %250 {offsets = [16, 0], sizes = [8, 32], strides = [1, 1]} : vector<64x32xf32> to vector<8x32xf32>
    %340 = arith.addf %339, %332 : vector<8x32xf32>
    %341 = arith.negf %340 : vector<8x32xf32>
    %342 = math.exp %341 : vector<8x32xf32>
    %cst_161 = arith.constant 1.000000e+00 : f32
    %343 = vector.broadcast %cst_161 : f32 to vector<8x32xf32>
    %344 = arith.addf %343, %342 : vector<8x32xf32>
    %345 = arith.divf %343, %344 : vector<8x32xf32>
    %346 = vector.extract_strided_slice %251 {offsets = [16, 0], sizes = [8, 32], strides = [1, 1]} : vector<64x32xf32> to vector<8x32xf32>
    %347 = arith.addf %346, %335 : vector<8x32xf32>
    %348 = arith.negf %347 : vector<8x32xf32>
    %349 = math.exp %348 : vector<8x32xf32>
    %cst_162 = arith.constant 1.000000e+00 : f32
    %350 = vector.broadcast %cst_162 : f32 to vector<8x32xf32>
    %351 = arith.addf %350, %349 : vector<8x32xf32>
    %352 = arith.divf %350, %351 : vector<8x32xf32>
    %353 = vector.extract_strided_slice %252 {offsets = [16, 0], sizes = [8, 32], strides = [1, 1]} : vector<64x32xf32> to vector<8x32xf32>
    %354 = arith.mulf %345, %338 : vector<8x32xf32>
    %355 = arith.addf %353, %354 : vector<8x32xf32>
    %356 = math.tanh %355 : vector<8x32xf32>
    %cst_163 = arith.constant 1.000000e+00 : f32
    %357 = vector.broadcast %cst_163 : f32 to vector<8x32xf32>
    %358 = arith.subf %357, %352 : vector<8x32xf32>
    %359 = arith.mulf %358, %356 : vector<8x32xf32>
    %360 = arith.mulf %352, %327 : vector<8x32xf32>
    %361 = arith.addf %359, %360 : vector<8x32xf32>
    %362 = arith.addf %328, %361 : vector<8x32xf32>
    %363 = arith.truncf %361 : vector<8x32xf32> to vector<8x32xbf16>
    %cst_164 = arith.constant dense<0.000000e+00> : vector<8x32xf32>
    %364 = tpu.matmul %363, %253, %cst_164 {dimension_numbers = #tpu.dot_dimension_numbers<[1], [0], [0], [1], [0, 0, 1, 1], [], []>} : vector<8x32xbf16>, vector<32x32xbf16>, vector<8x32xf32> -> vector<8x32xf32>
    %365 = vector.broadcast %256 : vector<1x32xf32> to vector<8x32xf32>
    %366 = arith.addf %364, %365 : vector<8x32xf32>
    %cst_165 = arith.constant dense<0.000000e+00> : vector<8x32xf32>
    %367 = tpu.matmul %363, %254, %cst_165 {dimension_numbers = #tpu.dot_dimension_numbers<[1], [0], [0], [1], [0, 0, 1, 1], [], []>} : vector<8x32xbf16>, vector<32x32xbf16>, vector<8x32xf32> -> vector<8x32xf32>
    %368 = vector.broadcast %257 : vector<1x32xf32> to vector<8x32xf32>
    %369 = arith.addf %367, %368 : vector<8x32xf32>
    %cst_166 = arith.constant dense<0.000000e+00> : vector<8x32xf32>
    %370 = tpu.matmul %363, %255, %cst_166 {dimension_numbers = #tpu.dot_dimension_numbers<[1], [0], [0], [1], [0, 0, 1, 1], [], []>} : vector<8x32xbf16>, vector<32x32xbf16>, vector<8x32xf32> -> vector<8x32xf32>
    %371 = vector.broadcast %258 : vector<1x32xf32> to vector<8x32xf32>
    %372 = arith.addf %370, %371 : vector<8x32xf32>
    %373 = vector.extract_strided_slice %250 {offsets = [24, 0], sizes = [8, 32], strides = [1, 1]} : vector<64x32xf32> to vector<8x32xf32>
    %374 = arith.addf %373, %366 : vector<8x32xf32>
    %375 = arith.negf %374 : vector<8x32xf32>
    %376 = math.exp %375 : vector<8x32xf32>
    %cst_167 = arith.constant 1.000000e+00 : f32
    %377 = vector.broadcast %cst_167 : f32 to vector<8x32xf32>
    %378 = arith.addf %377, %376 : vector<8x32xf32>
    %379 = arith.divf %377, %378 : vector<8x32xf32>
    %380 = vector.extract_strided_slice %251 {offsets = [24, 0], sizes = [8, 32], strides = [1, 1]} : vector<64x32xf32> to vector<8x32xf32>
    %381 = arith.addf %380, %369 : vector<8x32xf32>
    %382 = arith.negf %381 : vector<8x32xf32>
    %383 = math.exp %382 : vector<8x32xf32>
    %cst_168 = arith.constant 1.000000e+00 : f32
    %384 = vector.broadcast %cst_168 : f32 to vector<8x32xf32>
    %385 = arith.addf %384, %383 : vector<8x32xf32>
    %386 = arith.divf %384, %385 : vector<8x32xf32>
    %387 = vector.extract_strided_slice %252 {offsets = [24, 0], sizes = [8, 32], strides = [1, 1]} : vector<64x32xf32> to vector<8x32xf32>
    %388 = arith.mulf %379, %372 : vector<8x32xf32>
    %389 = arith.addf %387, %388 : vector<8x32xf32>
    %390 = math.tanh %389 : vector<8x32xf32>
    %cst_169 = arith.constant 1.000000e+00 : f32
    %391 = vector.broadcast %cst_169 : f32 to vector<8x32xf32>
    %392 = arith.subf %391, %386 : vector<8x32xf32>
    %393 = arith.mulf %392, %390 : vector<8x32xf32>
    %394 = arith.mulf %386, %361 : vector<8x32xf32>
    %395 = arith.addf %393, %394 : vector<8x32xf32>
    %396 = arith.addf %362, %395 : vector<8x32xf32>
    %397 = arith.truncf %395 : vector<8x32xf32> to vector<8x32xbf16>
    %cst_170 = arith.constant dense<0.000000e+00> : vector<8x32xf32>
    %398 = tpu.matmul %397, %253, %cst_170 {dimension_numbers = #tpu.dot_dimension_numbers<[1], [0], [0], [1], [0, 0, 1, 1], [], []>} : vector<8x32xbf16>, vector<32x32xbf16>, vector<8x32xf32> -> vector<8x32xf32>
    %399 = vector.broadcast %256 : vector<1x32xf32> to vector<8x32xf32>
    %400 = arith.addf %398, %399 : vector<8x32xf32>
    %cst_171 = arith.constant dense<0.000000e+00> : vector<8x32xf32>
    %401 = tpu.matmul %397, %254, %cst_171 {dimension_numbers = #tpu.dot_dimension_numbers<[1], [0], [0], [1], [0, 0, 1, 1], [], []>} : vector<8x32xbf16>, vector<32x32xbf16>, vector<8x32xf32> -> vector<8x32xf32>
    %402 = vector.broadcast %257 : vector<1x32xf32> to vector<8x32xf32>
    %403 = arith.addf %401, %402 : vector<8x32xf32>
    %cst_172 = arith.constant dense<0.000000e+00> : vector<8x32xf32>
    %404 = tpu.matmul %397, %255, %cst_172 {dimension_numbers = #tpu.dot_dimension_numbers<[1], [0], [0], [1], [0, 0, 1, 1], [], []>} : vector<8x32xbf16>, vector<32x32xbf16>, vector<8x32xf32> -> vector<8x32xf32>
    %405 = vector.broadcast %258 : vector<1x32xf32> to vector<8x32xf32>
    %406 = arith.addf %404, %405 : vector<8x32xf32>
    %407 = vector.extract_strided_slice %250 {offsets = [32, 0], sizes = [8, 32], strides = [1, 1]} : vector<64x32xf32> to vector<8x32xf32>
    %408 = arith.addf %407, %400 : vector<8x32xf32>
    %409 = arith.negf %408 : vector<8x32xf32>
    %410 = math.exp %409 : vector<8x32xf32>
    %cst_173 = arith.constant 1.000000e+00 : f32
    %411 = vector.broadcast %cst_173 : f32 to vector<8x32xf32>
    %412 = arith.addf %411, %410 : vector<8x32xf32>
    %413 = arith.divf %411, %412 : vector<8x32xf32>
    %414 = vector.extract_strided_slice %251 {offsets = [32, 0], sizes = [8, 32], strides = [1, 1]} : vector<64x32xf32> to vector<8x32xf32>
    %415 = arith.addf %414, %403 : vector<8x32xf32>
    %416 = arith.negf %415 : vector<8x32xf32>
    %417 = math.exp %416 : vector<8x32xf32>
    %cst_174 = arith.constant 1.000000e+00 : f32
    %418 = vector.broadcast %cst_174 : f32 to vector<8x32xf32>
    %419 = arith.addf %418, %417 : vector<8x32xf32>
    %420 = arith.divf %418, %419 : vector<8x32xf32>
    %421 = vector.extract_strided_slice %252 {offsets = [32, 0], sizes = [8, 32], strides = [1, 1]} : vector<64x32xf32> to vector<8x32xf32>
    %422 = arith.mulf %413, %406 : vector<8x32xf32>
    %423 = arith.addf %421, %422 : vector<8x32xf32>
    %424 = math.tanh %423 : vector<8x32xf32>
    %cst_175 = arith.constant 1.000000e+00 : f32
    %425 = vector.broadcast %cst_175 : f32 to vector<8x32xf32>
    %426 = arith.subf %425, %420 : vector<8x32xf32>
    %427 = arith.mulf %426, %424 : vector<8x32xf32>
    %428 = arith.mulf %420, %395 : vector<8x32xf32>
    %429 = arith.addf %427, %428 : vector<8x32xf32>
    %430 = arith.addf %396, %429 : vector<8x32xf32>
    %431 = arith.truncf %429 : vector<8x32xf32> to vector<8x32xbf16>
    %cst_176 = arith.constant dense<0.000000e+00> : vector<8x32xf32>
    %432 = tpu.matmul %431, %253, %cst_176 {dimension_numbers = #tpu.dot_dimension_numbers<[1], [0], [0], [1], [0, 0, 1, 1], [], []>} : vector<8x32xbf16>, vector<32x32xbf16>, vector<8x32xf32> -> vector<8x32xf32>
    %433 = vector.broadcast %256 : vector<1x32xf32> to vector<8x32xf32>
    %434 = arith.addf %432, %433 : vector<8x32xf32>
    %cst_177 = arith.constant dense<0.000000e+00> : vector<8x32xf32>
    %435 = tpu.matmul %431, %254, %cst_177 {dimension_numbers = #tpu.dot_dimension_numbers<[1], [0], [0], [1], [0, 0, 1, 1], [], []>} : vector<8x32xbf16>, vector<32x32xbf16>, vector<8x32xf32> -> vector<8x32xf32>
    %436 = vector.broadcast %257 : vector<1x32xf32> to vector<8x32xf32>
    %437 = arith.addf %435, %436 : vector<8x32xf32>
    %cst_178 = arith.constant dense<0.000000e+00> : vector<8x32xf32>
    %438 = tpu.matmul %431, %255, %cst_178 {dimension_numbers = #tpu.dot_dimension_numbers<[1], [0], [0], [1], [0, 0, 1, 1], [], []>} : vector<8x32xbf16>, vector<32x32xbf16>, vector<8x32xf32> -> vector<8x32xf32>
    %439 = vector.broadcast %258 : vector<1x32xf32> to vector<8x32xf32>
    %440 = arith.addf %438, %439 : vector<8x32xf32>
    %441 = vector.extract_strided_slice %250 {offsets = [40, 0], sizes = [8, 32], strides = [1, 1]} : vector<64x32xf32> to vector<8x32xf32>
    %442 = arith.addf %441, %434 : vector<8x32xf32>
    %443 = arith.negf %442 : vector<8x32xf32>
    %444 = math.exp %443 : vector<8x32xf32>
    %cst_179 = arith.constant 1.000000e+00 : f32
    %445 = vector.broadcast %cst_179 : f32 to vector<8x32xf32>
    %446 = arith.addf %445, %444 : vector<8x32xf32>
    %447 = arith.divf %445, %446 : vector<8x32xf32>
    %448 = vector.extract_strided_slice %251 {offsets = [40, 0], sizes = [8, 32], strides = [1, 1]} : vector<64x32xf32> to vector<8x32xf32>
    %449 = arith.addf %448, %437 : vector<8x32xf32>
    %450 = arith.negf %449 : vector<8x32xf32>
    %451 = math.exp %450 : vector<8x32xf32>
    %cst_180 = arith.constant 1.000000e+00 : f32
    %452 = vector.broadcast %cst_180 : f32 to vector<8x32xf32>
    %453 = arith.addf %452, %451 : vector<8x32xf32>
    %454 = arith.divf %452, %453 : vector<8x32xf32>
    %455 = vector.extract_strided_slice %252 {offsets = [40, 0], sizes = [8, 32], strides = [1, 1]} : vector<64x32xf32> to vector<8x32xf32>
    %456 = arith.mulf %447, %440 : vector<8x32xf32>
    %457 = arith.addf %455, %456 : vector<8x32xf32>
    %458 = math.tanh %457 : vector<8x32xf32>
    %cst_181 = arith.constant 1.000000e+00 : f32
    %459 = vector.broadcast %cst_181 : f32 to vector<8x32xf32>
    %460 = arith.subf %459, %454 : vector<8x32xf32>
    %461 = arith.mulf %460, %458 : vector<8x32xf32>
    %462 = arith.mulf %454, %429 : vector<8x32xf32>
    %463 = arith.addf %461, %462 : vector<8x32xf32>
    %464 = arith.addf %430, %463 : vector<8x32xf32>
    %465 = arith.truncf %463 : vector<8x32xf32> to vector<8x32xbf16>
    %cst_182 = arith.constant dense<0.000000e+00> : vector<8x32xf32>
    %466 = tpu.matmul %465, %253, %cst_182 {dimension_numbers = #tpu.dot_dimension_numbers<[1], [0], [0], [1], [0, 0, 1, 1], [], []>} : vector<8x32xbf16>, vector<32x32xbf16>, vector<8x32xf32> -> vector<8x32xf32>
    %467 = vector.broadcast %256 : vector<1x32xf32> to vector<8x32xf32>
    %468 = arith.addf %466, %467 : vector<8x32xf32>
    %cst_183 = arith.constant dense<0.000000e+00> : vector<8x32xf32>
    %469 = tpu.matmul %465, %254, %cst_183 {dimension_numbers = #tpu.dot_dimension_numbers<[1], [0], [0], [1], [0, 0, 1, 1], [], []>} : vector<8x32xbf16>, vector<32x32xbf16>, vector<8x32xf32> -> vector<8x32xf32>
    %470 = vector.broadcast %257 : vector<1x32xf32> to vector<8x32xf32>
    %471 = arith.addf %469, %470 : vector<8x32xf32>
    %cst_184 = arith.constant dense<0.000000e+00> : vector<8x32xf32>
    %472 = tpu.matmul %465, %255, %cst_184 {dimension_numbers = #tpu.dot_dimension_numbers<[1], [0], [0], [1], [0, 0, 1, 1], [], []>} : vector<8x32xbf16>, vector<32x32xbf16>, vector<8x32xf32> -> vector<8x32xf32>
    %473 = vector.broadcast %258 : vector<1x32xf32> to vector<8x32xf32>
    %474 = arith.addf %472, %473 : vector<8x32xf32>
    %475 = vector.extract_strided_slice %250 {offsets = [48, 0], sizes = [8, 32], strides = [1, 1]} : vector<64x32xf32> to vector<8x32xf32>
    %476 = arith.addf %475, %468 : vector<8x32xf32>
    %477 = arith.negf %476 : vector<8x32xf32>
    %478 = math.exp %477 : vector<8x32xf32>
    %cst_185 = arith.constant 1.000000e+00 : f32
    %479 = vector.broadcast %cst_185 : f32 to vector<8x32xf32>
    %480 = arith.addf %479, %478 : vector<8x32xf32>
    %481 = arith.divf %479, %480 : vector<8x32xf32>
    %482 = vector.extract_strided_slice %251 {offsets = [48, 0], sizes = [8, 32], strides = [1, 1]} : vector<64x32xf32> to vector<8x32xf32>
    %483 = arith.addf %482, %471 : vector<8x32xf32>
    %484 = arith.negf %483 : vector<8x32xf32>
    %485 = math.exp %484 : vector<8x32xf32>
    %cst_186 = arith.constant 1.000000e+00 : f32
    %486 = vector.broadcast %cst_186 : f32 to vector<8x32xf32>
    %487 = arith.addf %486, %485 : vector<8x32xf32>
    %488 = arith.divf %486, %487 : vector<8x32xf32>
    %489 = vector.extract_strided_slice %252 {offsets = [48, 0], sizes = [8, 32], strides = [1, 1]} : vector<64x32xf32> to vector<8x32xf32>
    %490 = arith.mulf %481, %474 : vector<8x32xf32>
    %491 = arith.addf %489, %490 : vector<8x32xf32>
    %492 = math.tanh %491 : vector<8x32xf32>
    %cst_187 = arith.constant 1.000000e+00 : f32
    %493 = vector.broadcast %cst_187 : f32 to vector<8x32xf32>
    %494 = arith.subf %493, %488 : vector<8x32xf32>
    %495 = arith.mulf %494, %492 : vector<8x32xf32>
    %496 = arith.mulf %488, %463 : vector<8x32xf32>
    %497 = arith.addf %495, %496 : vector<8x32xf32>
    %498 = arith.addf %464, %497 : vector<8x32xf32>
    %499 = arith.truncf %497 : vector<8x32xf32> to vector<8x32xbf16>
    %cst_188 = arith.constant dense<0.000000e+00> : vector<8x32xf32>
    %500 = tpu.matmul %499, %253, %cst_188 {dimension_numbers = #tpu.dot_dimension_numbers<[1], [0], [0], [1], [0, 0, 1, 1], [], []>} : vector<8x32xbf16>, vector<32x32xbf16>, vector<8x32xf32> -> vector<8x32xf32>
    %501 = vector.broadcast %256 : vector<1x32xf32> to vector<8x32xf32>
    %502 = arith.addf %500, %501 : vector<8x32xf32>
    %cst_189 = arith.constant dense<0.000000e+00> : vector<8x32xf32>
    %503 = tpu.matmul %499, %254, %cst_189 {dimension_numbers = #tpu.dot_dimension_numbers<[1], [0], [0], [1], [0, 0, 1, 1], [], []>} : vector<8x32xbf16>, vector<32x32xbf16>, vector<8x32xf32> -> vector<8x32xf32>
    %504 = vector.broadcast %257 : vector<1x32xf32> to vector<8x32xf32>
    %505 = arith.addf %503, %504 : vector<8x32xf32>
    %cst_190 = arith.constant dense<0.000000e+00> : vector<8x32xf32>
    %506 = tpu.matmul %499, %255, %cst_190 {dimension_numbers = #tpu.dot_dimension_numbers<[1], [0], [0], [1], [0, 0, 1, 1], [], []>} : vector<8x32xbf16>, vector<32x32xbf16>, vector<8x32xf32> -> vector<8x32xf32>
    %507 = vector.broadcast %258 : vector<1x32xf32> to vector<8x32xf32>
    %508 = arith.addf %506, %507 : vector<8x32xf32>
    %509 = vector.extract_strided_slice %250 {offsets = [56, 0], sizes = [8, 32], strides = [1, 1]} : vector<64x32xf32> to vector<8x32xf32>
    %510 = arith.addf %509, %502 : vector<8x32xf32>
    %511 = arith.negf %510 : vector<8x32xf32>
    %512 = math.exp %511 : vector<8x32xf32>
    %cst_191 = arith.constant 1.000000e+00 : f32
    %513 = vector.broadcast %cst_191 : f32 to vector<8x32xf32>
    %514 = arith.addf %513, %512 : vector<8x32xf32>
    %515 = arith.divf %513, %514 : vector<8x32xf32>
    %516 = vector.extract_strided_slice %251 {offsets = [56, 0], sizes = [8, 32], strides = [1, 1]} : vector<64x32xf32> to vector<8x32xf32>
    %517 = arith.addf %516, %505 : vector<8x32xf32>
    %518 = arith.negf %517 : vector<8x32xf32>
    %519 = math.exp %518 : vector<8x32xf32>
    %cst_192 = arith.constant 1.000000e+00 : f32
    %520 = vector.broadcast %cst_192 : f32 to vector<8x32xf32>
    %521 = arith.addf %520, %519 : vector<8x32xf32>
    %522 = arith.divf %520, %521 : vector<8x32xf32>
    %523 = vector.extract_strided_slice %252 {offsets = [56, 0], sizes = [8, 32], strides = [1, 1]} : vector<64x32xf32> to vector<8x32xf32>
    %524 = arith.mulf %515, %508 : vector<8x32xf32>
    %525 = arith.addf %523, %524 : vector<8x32xf32>
    %526 = math.tanh %525 : vector<8x32xf32>
    %cst_193 = arith.constant 1.000000e+00 : f32
    %527 = vector.broadcast %cst_193 : f32 to vector<8x32xf32>
    %528 = arith.subf %527, %522 : vector<8x32xf32>
    %529 = arith.mulf %528, %526 : vector<8x32xf32>
    %530 = arith.mulf %522, %497 : vector<8x32xf32>
    %531 = arith.addf %529, %530 : vector<8x32xf32>
    %532 = arith.addf %498, %531 : vector<8x32xf32>
    %533 = arith.truncf %532 : vector<8x32xf32> to vector<8x32xbf16>
    %c0_194 = arith.constant 0 : index
    %c0_195 = arith.constant 0 : index
    %534 = vector.load %arg12[%c0_194, %c0_195] : memref<32x128xbf16, #tpu.memory_space<vmem>>, vector<32x128xbf16>
    %cst_196 = arith.constant dense<0.000000e+00> : vector<8x128xf32>
    %535 = tpu.matmul %533, %534, %cst_196 {dimension_numbers = #tpu.dot_dimension_numbers<[1], [0], [0], [1], [0, 0, 1, 1], [], []>} : vector<8x32xbf16>, vector<32x128xbf16>, vector<8x128xf32> -> vector<8x128xf32>
    %c0_197 = arith.constant 0 : index
    %c0_198 = arith.constant 0 : index
    %536 = vector.load %arg13[%c0_197, %c0_198] : memref<1x128xf32, #tpu.memory_space<vmem>>, vector<1x128xf32>
    %537 = vector.broadcast %536 : vector<1x128xf32> to vector<8x128xf32>
    %538 = arith.addf %535, %537 : vector<8x128xf32>
    %cst_199 = arith.constant 0.000000e+00 : f32
    %539 = vector.broadcast %cst_199 : f32 to vector<8x128xf32>
    %540 = arith.maximumf %538, %539 : vector<8x128xf32>
    %541 = arith.truncf %540 : vector<8x128xf32> to vector<8x128xbf16>
    %c0_200 = arith.constant 0 : index
    %c0_201 = arith.constant 0 : index
    %542 = vector.load %arg14[%c0_200, %c0_201] : memref<128x128xbf16, #tpu.memory_space<vmem>>, vector<128x128xbf16>
    %cst_202 = arith.constant dense<0.000000e+00> : vector<8x128xf32>
    %543 = tpu.matmul %541, %542, %cst_202 {dimension_numbers = #tpu.dot_dimension_numbers<[1], [0], [0], [1], [0, 0, 1, 1], [], []>} : vector<8x128xbf16>, vector<128x128xbf16>, vector<8x128xf32> -> vector<8x128xf32>
    %c0_203 = arith.constant 0 : index
    %c0_204 = arith.constant 0 : index
    %544 = vector.load %arg15[%c0_203, %c0_204] : memref<1x128xf32, #tpu.memory_space<vmem>>, vector<1x128xf32>
    %545 = vector.broadcast %544 : vector<1x128xf32> to vector<8x128xf32>
    %546 = arith.addf %543, %545 : vector<8x128xf32>
    %c0_205 = arith.constant 0 : index
    %c0_206 = arith.constant 0 : index
    %547 = vector.load %arg16[%c0_205, %c0_206] : memref<8x128xf32, #tpu.memory_space<vmem>>, vector<8x128xf32>
    tpu.vector_store %arg16[%c0_205, %c0_206], %546 {strides = array<i32>} : memref<8x128xf32, #tpu.memory_space<vmem>>, vector<8x128xf32>,
    return
  }
}

</mosaic_0001>

<llo_original>
// kernel: tpu_custom_call.1
$region0: #{tpu_custom_call.1}
  #allocation0 [shape = 'u32[]', space=smem, size = 0x4, offset = 0x4, fixed_abs, tag = 'smem constant byte address 0x4 - core index']
  #allocation1 [shape = 'u32[144,128]{1,0:T(1,128)}', space=vmem, size = 0x12000, scoped, tag = 'internal scratch']
  #allocation2 [shape = 'f32[64,32]{1,0:T(8,128)}', space=vmem, size = 0x8000, scoped, tag = 'scratch operand']
  #allocation3 [shape = 'f32[1]{0:T(128)S(6)}', space=smem, size = 0x200, scoped, tag = 'scoped memory for tpu_custom_call.1']
  %s0 = inlined_call_operand.vmem [shape: s32[2,8], index: 0, kind: input, shape index: {}]
  %s1 = inlined_call_operand.hbm [shape: s32[2], index: 1, kind: input, shape index: {}]
  %s2 = inlined_call_operand.<no memory space> [shape: f32[1], index: 2, kind: input, shape index: {}]
  %s3 = inlined_call_operand.vmem [shape: f32[64,32], index: 3, kind: input, shape index: {}]
  %s4 = inlined_call_operand.vmem [shape: bf16[32,96], index: 4, kind: input, shape index: {}]
  %s5 = inlined_call_operand.hbm [shape: f32[1,96], index: 5, kind: input, shape index: {}]
  %s6 = inlined_call_operand.vmem [shape: bf16[32,32], index: 6, kind: input, shape index: {}]
  %s7 = inlined_call_operand.vmem [shape: bf16[32,32], index: 7, kind: input, shape index: {}]
  %s8 = inlined_call_operand.hbm [shape: bf16[32,32], index: 8, kind: input, shape index: {}]
  %s9 = inlined_call_operand.hbm [shape: f32[1,32], index: 9, kind: input, shape index: {}]
  %s10 = inlined_call_operand.vmem [shape: f32[1,32], index: 10, kind: input, shape index: {}]
  %s11 = inlined_call_operand.vmem [shape: f32[1,32], index: 11, kind: input, shape index: {}]
  %s12 = inlined_call_operand.vmem [shape: bf16[32,128], index: 12, kind: input, shape index: {}]
  %s13 = inlined_call_operand.vmem [shape: f32[1,128], index: 13, kind: input, shape index: {}]
  %s14 = inlined_call_operand.vmem [shape: bf16[128,128], index: 14, kind: input, shape index: {}]
  %s15 = inlined_call_operand.vmem [shape: f32[1,128], index: 15, kind: input, shape index: {}]
  %s16 = inlined_call_operand.hbm [shape: f32[8,128], index: 16, kind: output, shape index: {}]
  %s17 = sld [smem:[#allocation0]]
  $region94: #{tpu_custom_call.1} parent=0
    _
  %s19 = ssub.s32 1, %s17
  %s20 = scalar_select 0, %s19, %s17
  %21 = sst [smem:[#allocation3]] %s2
  $region1: #{tpu_custom_call.1} parent=0
    #allocation4 [shape = 'u8[1024]{0}', space=smem, size = 0x400, scoped, tag = 'input window, operand 0, single buffered']
    #allocation5 [shape = 's32[1]{0}', space=sflag, size = 0x4, scoped, tag = 'scoped memory for tpu_custom_call.1']
    #allocation6 [shape = 's32[1]{0}', space=sflag, size = 0x4, scoped, tag = 'scoped memory for tpu_custom_call.1']
    #allocation7 [shape = 's32[1]{0}', space=sflag, size = 0x4, scoped, tag = 'scoped memory for tpu_custom_call.1']
    #allocation8 [shape = 's32[1]{0}', space=sflag, size = 0x4, scoped, tag = 'scoped memory for tpu_custom_call.1']
    #allocation9 [shape = 'u8[512]{0}', space=smem, size = 0x200, scoped, tag = 'input window, operand 1, single buffered']
    #allocation10 [shape = 'u8[512]{0}', space=vmem, size = 0x400, scoped, tag = 'input window, operand 5, single buffered']
    #allocation11 [shape = 'u8[8192]{0}', space=vmem, size = 0x2000, scoped, tag = 'input window, operand 8, single buffered']
    #allocation12 [shape = 's32[1]{0}', space=sflag, size = 0x4, scoped, tag = 'scoped memory for tpu_custom_call.1']
    #allocation13 [shape = 'u8[512]{0}', space=vmem, size = 0x400, scoped, tag = 'input window, operand 9, single buffered']
    #allocation14 [shape = 'u8[4096]{0}', space=vmem, size = 0x1000, scoped, tag = 'output window, operand 0, single buffered']
    %22 = vsyncpa [#allocation8], 0
    %23 = vsyncpa [#allocation7], 0
    %24 = vsyncpa [#allocation5], 0
    %25 = vsyncpa [#allocation12], 0
    %26 = vsyncpa [#allocation6], 0
    // Predicated region
    $region2: #{tpu_custom_call.1} parent=1 // pred_check
      _
    $region3: #{tpu_custom_call.1} parent=1 // pred_check_branch
      %28 = sbr.rel (0) target = $region5
    $region4: #{tpu_custom_call.1} parent=1 // pred_region
      %s30 = ssub.s32 32, 32
      %31 = vsyncadd [#allocation8], %s30
      %s33 = sshll.u32 %s0, 4
      %s34 = int_to_ptr.vmem [resolvable:$true] %s33
      %36 = dma.vmem_to_smem %s34, 32, [#allocation4], [#allocation8]
    $region5: #{tpu_custom_call.1} parent=1 // pred_fallthru
      _
    // Predicated region
    $region6: #{tpu_custom_call.1} parent=1 // pred_check
      _
    $region7: #{tpu_custom_call.1} parent=1 // pred_check_branch
      %38 = sbr.rel (0) target = $region9
    $region8: #{tpu_custom_call.1} parent=1 // pred_region
      %s40 = ssub.s32 16, 16
      %41 = vsyncadd [#allocation7], %s40
      %44 = dma.hbm_to_smem %s1, 16, [#allocation9], [#allocation7]
    $region9: #{tpu_custom_call.1} parent=1 // pred_fallthru
      _
    // Predicated region
    $region10: #{tpu_custom_call.1} parent=1 // pred_check
      _
    $region11: #{tpu_custom_call.1} parent=1 // pred_check_branch
      %46 = sbr.rel (0) target = $region13
    $region12: #{tpu_custom_call.1} parent=1 // pred_region
      _
    $region13: #{tpu_custom_call.1} parent=1 // pred_fallthru
      _
    // Predicated region
    $region14: #{tpu_custom_call.1} parent=1 // pred_check
      _
    $region15: #{tpu_custom_call.1} parent=1 // pred_check_branch
      %48 = sbr.rel (0) target = $region17
    $region16: #{tpu_custom_call.1} parent=1 // pred_region
      _
    $region17: #{tpu_custom_call.1} parent=1 // pred_fallthru
      _
    // Predicated region
    $region18: #{tpu_custom_call.1} parent=1 // pred_check
      _
    $region19: #{tpu_custom_call.1} parent=1 // pred_check_branch
      %50 = sbr.rel (0) target = $region21
    $region20: #{tpu_custom_call.1} parent=1 // pred_region
      _
    $region21: #{tpu_custom_call.1} parent=1 // pred_fallthru
      _
    // Predicated region
    $region22: #{tpu_custom_call.1} parent=1 // pred_check
      _
    $region23: #{tpu_custom_call.1} parent=1 // pred_check_branch
      %52 = sbr.rel (0) target = $region25
    $region24: #{tpu_custom_call.1} parent=1 // pred_region
      %s54 = ssub.s32 16, 16
      %55 = vsyncadd [#allocation5], %s54
      %s57 = sshll.u32 [#allocation10], 4
      %s58 = int_to_ptr.vmem [resolvable:$true] %s57
      %60 = dma.hbm_to_vmem [thread:$0]  %s5, 16, %s58, [#allocation5]
    $region25: #{tpu_custom_call.1} parent=1 // pred_fallthru
      _
    // Predicated region
    $region26: #{tpu_custom_call.1} parent=1 // pred_check
      _
    $region27: #{tpu_custom_call.1} parent=1 // pred_check_branch
      %62 = sbr.rel (0) target = $region29
    $region28: #{tpu_custom_call.1} parent=1 // pred_region
      _
    $region29: #{tpu_custom_call.1} parent=1 // pred_fallthru
      _
    // Predicated region
    $region30: #{tpu_custom_call.1} parent=1 // pred_check
      _
    $region31: #{tpu_custom_call.1} parent=1 // pred_check_branch
      %64 = sbr.rel (0) target = $region33
    $region32: #{tpu_custom_call.1} parent=1 // pred_region
      _
    $region33: #{tpu_custom_call.1} parent=1 // pred_fallthru
      _
    // Predicated region
    $region34: #{tpu_custom_call.1} parent=1 // pred_check
      _
    $region35: #{tpu_custom_call.1} parent=1 // pred_check_branch
      %66 = sbr.rel (0) target = $region37
    $region36: #{tpu_custom_call.1} parent=1 // pred_region
      %s68 = ssub.s32 256, 256
      %69 = vsyncadd [#allocation12], %s68
      %s70 = sshll.u32 [#allocation11], 4
      %s71 = int_to_ptr.vmem [resolvable:$true] %s70
      %76 = dma.hbm_to_vmem [thread:$0]  %s8, 256, %s71, [#allocation12], 64, 64, 4
    $region37: #{tpu_custom_call.1} parent=1 // pred_fallthru
      _
    // Predicated region
    $region38: #{tpu_custom_call.1} parent=1 // pred_check
      _
    $region39: #{tpu_custom_call.1} parent=1 // pred_check_branch
      %78 = sbr.rel (0) target = $region41
    $region40: #{tpu_custom_call.1} parent=1 // pred_region
      %s80 = ssub.s32 16, 16
      %81 = vsyncadd [#allocation12], %s80
      %s83 = sshll.u32 [#allocation13], 4
      %s84 = int_to_ptr.vmem [resolvable:$true] %s83
      %86 = dma.hbm_to_vmem [thread:$0]  %s9, 16, %s84, [#allocation12]
    $region41: #{tpu_custom_call.1} parent=1 // pred_fallthru
      _
    // Predicated region
    $region42: #{tpu_custom_call.1} parent=1 // pred_check
      _
    $region43: #{tpu_custom_call.1} parent=1 // pred_check_branch
      %88 = sbr.rel (0) target = $region45
    $region44: #{tpu_custom_call.1} parent=1 // pred_region
      _
    $region45: #{tpu_custom_call.1} parent=1 // pred_fallthru
      _
    // Predicated region
    $region46: #{tpu_custom_call.1} parent=1 // pred_check
      _
    $region47: #{tpu_custom_call.1} parent=1 // pred_check_branch
      %90 = sbr.rel (0) target = $region49
    $region48: #{tpu_custom_call.1} parent=1 // pred_region
      _
    $region49: #{tpu_custom_call.1} parent=1 // pred_fallthru
      _
    // Predicated region
    $region50: #{tpu_custom_call.1} parent=1 // pred_check
      _
    $region51: #{tpu_custom_call.1} parent=1 // pred_check_branch
      %92 = sbr.rel (0) target = $region53
    $region52: #{tpu_custom_call.1} parent=1 // pred_region
      _
    $region53: #{tpu_custom_call.1} parent=1 // pred_fallthru
      _
    // Predicated region
    $region54: #{tpu_custom_call.1} parent=1 // pred_check
      _
    $region55: #{tpu_custom_call.1} parent=1 // pred_check_branch
      %94 = sbr.rel (0) target = $region57
    $region56: #{tpu_custom_call.1} parent=1 // pred_region
      _
    $region57: #{tpu_custom_call.1} parent=1 // pred_fallthru
      _
    // Predicated region
    $region58: #{tpu_custom_call.1} parent=1 // pred_check
      _
    $region59: #{tpu_custom_call.1} parent=1 // pred_check_branch
      %96 = sbr.rel (0) target = $region61
    $region60: #{tpu_custom_call.1} parent=1 // pred_region
      _
    $region61: #{tpu_custom_call.1} parent=1 // pred_fallthru
      _
    // Predicated region
    $region62: #{tpu_custom_call.1} parent=1 // pred_check
      _
    $region63: #{tpu_custom_call.1} parent=1 // pred_check_branch
      %98 = sbr.rel (0) target = $region65
    $region64: #{tpu_custom_call.1} parent=1 // pred_region
      _
    $region65: #{tpu_custom_call.1} parent=1 // pred_fallthru
      _
    // Predicated region
    $region66: #{tpu_custom_call.1} parent=1 // pred_check
      _
    $region67: #{tpu_custom_call.1} parent=1 // pred_check_branch
      %100 = sbr.rel (0) target = $region69
    $region68: #{tpu_custom_call.1} parent=1 // pred_region
      %101 = dma.done [#allocation8], 32
    $region69: #{tpu_custom_call.1} parent=1 // pred_fallthru
      _
    // Predicated region
    $region70: #{tpu_custom_call.1} parent=1 // pred_check
      _
    $region71: #{tpu_custom_call.1} parent=1 // pred_check_branch
      %103 = sbr.rel (0) target = $region73
    $region72: #{tpu_custom_call.1} parent=1 // pred_region
      %104 = dma.done [#allocation7], 16
    $region73: #{tpu_custom_call.1} parent=1 // pred_fallthru
      _
    // Predicated region
    $region74: #{tpu_custom_call.1} parent=1 // pred_check
      _
    $region75: #{tpu_custom_call.1} parent=1 // pred_check_branch
      %106 = sbr.rel (0) target = $region77
    $region76: #{tpu_custom_call.1} parent=1 // pred_region
      %107 = dma.done [#allocation5], 16
    $region77: #{tpu_custom_call.1} parent=1 // pred_fallthru
      _
    // Predicated region
    $region78: #{tpu_custom_call.1} parent=1 // pred_check
      _
    $region79: #{tpu_custom_call.1} parent=1 // pred_check_branch
      %109 = sbr.rel (0) target = $region81
    $region80: #{tpu_custom_call.1} parent=1 // pred_region
      %110 = dma.done [#allocation12], 256
    $region81: #{tpu_custom_call.1} parent=1 // pred_fallthru
      _
    // Predicated region
    $region82: #{tpu_custom_call.1} parent=1 // pred_check
      _
    $region83: #{tpu_custom_call.1} parent=1 // pred_check_branch
      %112 = sbr.rel (0) target = $region85
    $region84: #{tpu_custom_call.1} parent=1 // pred_region
      %113 = dma.done [#allocation12], 16
    $region85: #{tpu_custom_call.1} parent=1 // pred_fallthru
      _
    %114 = sfence
    %s116 = sld [smem:[#allocation3]]
    %vm117 = vcmask 261120
    %118 = vst.msk [vmem:[#allocation2] sm:$0xff] %vm117, 0.0
    %119 = vst.msk [vmem:[#allocation2 + $0x8] sm:$0xff] %vm117, 0.0
    %120 = vst.msk [vmem:[#allocation2 + $0x10] sm:$0xff] %vm117, 0.0
    %121 = vst.msk [vmem:[#allocation2 + $0x18] sm:$0xff] %vm117, 0.0
    %122 = vst.msk [vmem:[#allocation2 + $0x20] sm:$0xff] %vm117, 0.0
    %123 = vst.msk [vmem:[#allocation2 + $0x28] sm:$0xff] %vm117, 0.0
    %124 = vst.msk [vmem:[#allocation2 + $0x30] sm:$0xff] %vm117, 0.0
    %125 = vst.msk [vmem:[#allocation2 + $0x38] sm:$0xff] %vm117, 0.0
    %s126 = sld [smem:[#allocation4]]
    %s127 = sld [smem:[#allocation9]]
    %s128 = smul.u32 %s127, 128
    %s129 = sld [smem:[#allocation4 + %s128]]
    %s130 = scalar_lea.vmem %s3, %s126
    %v131 = vld [vmem:[%s130] sm:$0x1]
    %v132 = vstv %s116
    %v133 = vmul.f32 %v132, %v131
    %s134 = ssub.f32 1.0, %s116
    %s135 = scalar_lea.vmem %s3, %s129
    %v136 = vld [vmem:[%s135] sm:$0x1]
    %v137 = vstv %s134
    %v138 = vmul.f32 %v137, %v136
    %v139 = vadd.f32 %v133, %v138
    %vm140 = vcmask 253952
    %141 = vst.msk [vmem:[#allocation2] sm:$0x1] %vm140, %v139
    %s142 = sld [smem:[#allocation4 + $0x80]]
    %s143 = sld [smem:[#allocation9 + $0x1]]
    %s144 = smul.u32 %s143, 128
    %s145 = sld [smem:[#allocation4 + %s144]]
    %s146 = scalar_lea.vmem %s3, %s142
    %v147 = vld [vmem:[%s146] sm:$0x1]
    %v148 = vmul.f32 %v132, %v147
    %s149 = scalar_lea.vmem %s3, %s145
    %v150 = vld [vmem:[%s149] sm:$0x1]
    %v151 = vmul.f32 %v137, %v150
    %v152 = vadd.f32 %v148, %v151
    %153 = vst.msk [vmem:[#allocation2 + $0x1] sm:$0x1] %vm140, %v152
    %s154 = sld [smem:[#allocation4 + $0x1]]
    %s155 = sld [smem:[#allocation9]]
    %s156 = smul.u32 %s155, 128
    %s157 = sadd.s32 %s156, 1
    %s158 = sld [smem:[#allocation4 + %s157]]
    %s159 = scalar_lea.vmem %s3, %s154
    %v160 = vld [vmem:[%s159] sm:$0x1]
    %v161 = vmul.f32 %v132, %v160
    %s162 = scalar_lea.vmem %s3, %s158
    %v163 = vld [vmem:[%s162] sm:$0x1]
    %v164 = vmul.f32 %v137, %v163
    %v165 = vadd.f32 %v161, %v164
    %166 = vst.msk [vmem:[#allocation2 + $0x8] sm:$0x1] %vm140, %v165
    %s167 = sld [smem:[#allocation4 + $0x81]]
    %s168 = sld [smem:[#allocation9 + $0x1]]
    %s169 = smul.u32 %s168, 128
    %s170 = sadd.s32 %s169, 1
    %s171 = sld [smem:[#allocation4 + %s170]]
    %s172 = scalar_lea.vmem %s3, %s167
    %v173 = vld [vmem:[%s172] sm:$0x1]
    %v174 = vmul.f32 %v132, %v173
    %s175 = scalar_lea.vmem %s3, %s171
    %v176 = vld [vmem:[%s175] sm:$0x1]
    %v177 = vmul.f32 %v137, %v176
    %v178 = vadd.f32 %v174, %v177
    %179 = vst.msk [vmem:[#allocation2 + $0x9] sm:$0x1] %vm140, %v178
    %s180 = sld [smem:[#allocation4 + $0x2]]
    %s181 = sld [smem:[#allocation9]]
    %s182 = smul.u32 %s181, 128
    %s183 = sadd.s32 %s182, 2
    %s184 = sld [smem:[#allocation4 + %s183]]
    %s185 = scalar_lea.vmem %s3, %s180
    %v186 = vld [vmem:[%s185] sm:$0x1]
    %v187 = vmul.f32 %v132, %v186
    %s188 = scalar_lea.vmem %s3, %s184
    %v189 = vld [vmem:[%s188] sm:$0x1]
    %v190 = vmul.f32 %v137, %v189
    %v191 = vadd.f32 %v187, %v190
    %192 = vst.msk [vmem:[#allocation2 + $0x10] sm:$0x1] %vm140, %v191
    %s193 = sld [smem:[#allocation4 + $0x82]]
    %s194 = sld [smem:[#allocation9 + $0x1]]
    %s195 = smul.u32 %s194, 128
    %s196 = sadd.s32 %s195, 2
    %s197 = sld [smem:[#allocation4 + %s196]]
    %s198 = scalar_lea.vmem %s3, %s193
    %v199 = vld [vmem:[%s198] sm:$0x1]
    %v200 = vmul.f32 %v132, %v199
    %s201 = scalar_lea.vmem %s3, %s197
    %v202 = vld [vmem:[%s201] sm:$0x1]
    %v203 = vmul.f32 %v137, %v202
    %v204 = vadd.f32 %v200, %v203
    %205 = vst.msk [vmem:[#allocation2 + $0x11] sm:$0x1] %vm140, %v204
    %s206 = sld [smem:[#allocation4 + $0x3]]
    %s207 = sld [smem:[#allocation9]]
    %s208 = smul.u32 %s207, 128
    %s209 = sadd.s32 %s208, 3
    %s210 = sld [smem:[#allocation4 + %s209]]
    %s211 = scalar_lea.vmem %s3, %s206
    %v212 = vld [vmem:[%s211] sm:$0x1]
    %v213 = vmul.f32 %v132, %v212
    %s214 = scalar_lea.vmem %s3, %s210
    %v215 = vld [vmem:[%s214] sm:$0x1]
    %v216 = vmul.f32 %v137, %v215
    %v217 = vadd.f32 %v213, %v216
    %218 = vst.msk [vmem:[#allocation2 + $0x18] sm:$0x1] %vm140, %v217
    %s219 = sld [smem:[#allocation4 + $0x83]]
    %s220 = sld [smem:[#allocation9 + $0x1]]
    %s221 = smul.u32 %s220, 128
    %s222 = sadd.s32 %s221, 3
    %s223 = sld [smem:[#allocation4 + %s222]]
    %s224 = scalar_lea.vmem %s3, %s219
    %v225 = vld [vmem:[%s224] sm:$0x1]
    %v226 = vmul.f32 %v132, %v225
    %s227 = scalar_lea.vmem %s3, %s223
    %v228 = vld [vmem:[%s227] sm:$0x1]
    %v229 = vmul.f32 %v137, %v228
    %v230 = vadd.f32 %v226, %v229
    %231 = vst.msk [vmem:[#allocation2 + $0x19] sm:$0x1] %vm140, %v230
    %s232 = sld [smem:[#allocation4 + $0x4]]
    %s233 = sld [smem:[#allocation9]]
    %s234 = smul.u32 %s233, 128
    %s235 = sadd.s32 %s234, 4
    %s236 = sld [smem:[#allocation4 + %s235]]
    %s237 = scalar_lea.vmem %s3, %s232
    %v238 = vld [vmem:[%s237] sm:$0x1]
    %v239 = vmul.f32 %v132, %v238
    %s240 = scalar_lea.vmem %s3, %s236
    %v241 = vld [vmem:[%s240] sm:$0x1]
    %v242 = vmul.f32 %v137, %v241
    %v243 = vadd.f32 %v239, %v242
    %244 = vst.msk [vmem:[#allocation2 + $0x20] sm:$0x1] %vm140, %v243
    %s245 = sld [smem:[#allocation4 + $0x84]]
    %s246 = sld [smem:[#allocation9 + $0x1]]
    %s247 = smul.u32 %s246, 128
    %s248 = sadd.s32 %s247, 4
    %s249 = sld [smem:[#allocation4 + %s248]]
    %s250 = scalar_lea.vmem %s3, %s245
    %v251 = vld [vmem:[%s250] sm:$0x1]
    %v252 = vmul.f32 %v132, %v251
    %s253 = scalar_lea.vmem %s3, %s249
    %v254 = vld [vmem:[%s253] sm:$0x1]
    %v255 = vmul.f32 %v137, %v254
    %v256 = vadd.f32 %v252, %v255
    %257 = vst.msk [vmem:[#allocation2 + $0x21] sm:$0x1] %vm140, %v256
    %s258 = sld [smem:[#allocation4 + $0x5]]
    %s259 = sld [smem:[#allocation9]]
    %s260 = smul.u32 %s259, 128
    %s261 = sadd.s32 %s260, 5
    %s262 = sld [smem:[#allocation4 + %s261]]
    %s263 = scalar_lea.vmem %s3, %s258
    %v264 = vld [vmem:[%s263] sm:$0x1]
    %v265 = vmul.f32 %v132, %v264
    %s266 = scalar_lea.vmem %s3, %s262
    %v267 = vld [vmem:[%s266] sm:$0x1]
    %v268 = vmul.f32 %v137, %v267
    %v269 = vadd.f32 %v265, %v268
    %270 = vst.msk [vmem:[#allocation2 + $0x28] sm:$0x1] %vm140, %v269
    %s271 = sld [smem:[#allocation4 + $0x85]]
    %s272 = sld [smem:[#allocation9 + $0x1]]
    %s273 = smul.u32 %s272, 128
    %s274 = sadd.s32 %s273, 5
    %s275 = sld [smem:[#allocation4 + %s274]]
    %s276 = scalar_lea.vmem %s3, %s271
    %v277 = vld [vmem:[%s276] sm:$0x1]
    %v278 = vmul.f32 %v132, %v277
    %s279 = scalar_lea.vmem %s3, %s275
    %v280 = vld [vmem:[%s279] sm:$0x1]
    %v281 = vmul.f32 %v137, %v280
    %v282 = vadd.f32 %v278, %v281
    %283 = vst.msk [vmem:[#allocation2 + $0x29] sm:$0x1] %vm140, %v282
    %s284 = sld [smem:[#allocation4 + $0x6]]
    %s285 = sld [smem:[#allocation9]]
    %s286 = smul.u32 %s285, 128
    %s287 = sadd.s32 %s286, 6
    %s288 = sld [smem:[#allocation4 + %s287]]
    %s289 = scalar_lea.vmem %s3, %s284
    %v290 = vld [vmem:[%s289] sm:$0x1]
    %v291 = vmul.f32 %v132, %v290
    %s292 = scalar_lea.vmem %s3, %s288
    %v293 = vld [vmem:[%s292] sm:$0x1]
    %v294 = vmul.f32 %v137, %v293
    %v295 = vadd.f32 %v291, %v294
    %296 = vst.msk [vmem:[#allocation2 + $0x30] sm:$0x1] %vm140, %v295
    %s297 = sld [smem:[#allocation4 + $0x86]]
    %s298 = sld [smem:[#allocation9 + $0x1]]
    %s299 = smul.u32 %s298, 128
    %s300 = sadd.s32 %s299, 6
    %s301 = sld [smem:[#allocation4 + %s300]]
    %s302 = scalar_lea.vmem %s3, %s297
    %v303 = vld [vmem:[%s302] sm:$0x1]
    %v304 = vmul.f32 %v132, %v303
    %s305 = scalar_lea.vmem %s3, %s301
    %v306 = vld [vmem:[%s305] sm:$0x1]
    %v307 = vmul.f32 %v137, %v306
    %v308 = vadd.f32 %v304, %v307
    %309 = vst.msk [vmem:[#allocation2 + $0x31] sm:$0x1] %vm140, %v308
    %s310 = sld [smem:[#allocation4 + $0x7]]
    %s311 = sld [smem:[#allocation9]]
    %s312 = smul.u32 %s311, 128
    %s313 = sadd.s32 %s312, 7
    %s314 = sld [smem:[#allocation4 + %s313]]
    %s315 = scalar_lea.vmem %s3, %s310
    %v316 = vld [vmem:[%s315] sm:$0x1]
    %v317 = vmul.f32 %v132, %v316
    %s318 = scalar_lea.vmem %s3, %s314
    %v319 = vld [vmem:[%s318] sm:$0x1]
    %v320 = vmul.f32 %v137, %v319
    %v321 = vadd.f32 %v317, %v320
    %322 = vst.msk [vmem:[#allocation2 + $0x38] sm:$0x1] %vm140, %v321
    %s323 = sld [smem:[#allocation4 + $0x87]]
    %s324 = sld [smem:[#allocation9 + $0x1]]
    %s325 = smul.u32 %s324, 128
    %s326 = sadd.s32 %s325, 7
    %s327 = sld [smem:[#allocation4 + %s326]]
    %s328 = scalar_lea.vmem %s3, %s323
    %v329 = vld [vmem:[%s328] sm:$0x1]
    %v330 = vmul.f32 %v132, %v329
    %s331 = scalar_lea.vmem %s3, %s327
    %v332 = vld [vmem:[%s331] sm:$0x1]
    %v333 = vmul.f32 %v137, %v332
    %v334 = vadd.f32 %v330, %v333
    %335 = vst.msk [vmem:[#allocation2 + $0x39] sm:$0x1] %vm140, %v334
    %v336 = vld [vmem:[#allocation2] sm:$0xff]
    %v337 = vld [vmem:[#allocation2 + $0x8] sm:$0xff]
    %v338 = vld [vmem:[#allocation2 + $0x10] sm:$0xff]
    %v339 = vld [vmem:[#allocation2 + $0x18] sm:$0xff]
    %v340 = vld [vmem:[#allocation2 + $0x20] sm:$0xff]
    %v341 = vld [vmem:[#allocation2 + $0x28] sm:$0xff]
    %v342 = vld [vmem:[#allocation2 + $0x30] sm:$0xff]
    %v343 = vld [vmem:[#allocation2 + $0x38] sm:$0xff]
    %v344 = vpack.c.bf16 %v337, %v336
    %v345 = vpack.c.bf16 %v339, %v338
    %v346 = vpack.c.bf16 %v341, %v340
    %v347 = vpack.c.bf16 %v343, %v342
    %v348 = vld [vmem:[%s4] sm:$0xf]
    %v349 = vld [vmem:[%s4 + $0x4] sm:$0xf]
    %v350 = vld [vmem:[%s4 + $0x8] sm:$0xf]
    %v351 = vld [vmem:[%s4 + $0xc] sm:$0xf]
    %v352 = vld [vmem:[#allocation10] sm:$0x1]
    %v354 = vlaneseq
    %v355 = vshrl.u32 %v354, 7
    %v356 = vsub.s32 0, %v355
    %v357 = vrot.slane %v352, %v356
    %v363 = vunpack.c.l.b16 %v348
    %v364 = vunpack.c.l.b16 %v349
    %v365 = vunpack.c.l.b16 %v350
    %v366 = vunpack.c.l.b16 %v351
    %v367 = vpack.c.b16 %v364, %v363
    %v368 = vpack.c.b16 %v366, %v365
    %v372 = vsel %vm117, %v344, 0
    %v375 = vsel %vm117, %v345, 0
    %v378 = vsel %vm117, %v346, 0
    %v381 = vsel %vm117, %v347, 0
    %383 = vmatprep.subr.bf16.mxu0 0
    %384 = vmatpush1.bf16.msra.mxu0 %v367
    %385 = vmatprep.subr.bf16.mxu0 0
    %386 = vmatpush1.bf16.msra.mxu0 %v368
    %387 = vmatprep.subr.bf16.mxu0 0
    %388 = vmatpush1.bf16.msra.mxu0 0
    %389 = vmatprep.subr.bf16.mxu0 0
    %390 = vmatpush1.bf16.msra.mxu0 0
    %391 = vmatprep.subr.bf16.mxu0 0
    %392 = vmatpush1.bf16.msra.mxu0 0
    %393 = vmatprep.subr.bf16.mxu0 0
    %394 = vmatpush1.bf16.msra.mxu0 0
    %395 = vmatprep.subr.bf16.mxu0 0
    %396 = vmatpush1.bf16.msra.mxu0 0
    %397 = vmatprep.subr.bf16.mxu0 0
    %398 = vmatpush1.bf16.msra.mxu0 0
    %399 = vmatprep.subr.bf16.mxu0 0
    %400 = vmatpush1.bf16.msra.mxu0 0
    %401 = vmatprep.subr.bf16.mxu0 0
    %402 = vmatpush1.bf16.msra.mxu0 0
    %403 = vmatprep.subr.bf16.mxu0 0
    %404 = vmatpush1.bf16.msra.mxu0 0
    %405 = vmatprep.subr.bf16.mxu0 0
    %406 = vmatpush1.bf16.msra.mxu0 0
    %407 = vmatprep.subr.bf16.mxu0 0
    %408 = vmatpush1.bf16.msra.mxu0 0
    %409 = vmatprep.subr.bf16.mxu0 0
    %410 = vmatpush1.bf16.msra.mxu0 0
    %411 = vmatprep.subr.bf16.mxu0 0
    %412 = vmatpush1.bf16.msra.mxu0 0
    %413 = vmatprep.subr.bf16.mxu0 0
    %414 = vmatpush1.bf16.msra.mxu0 0
    %415 = vmatprep.mubr.bf16.mxu0 0
    %416 = vmatmul.mubr.bf16.gmra.mrb[0].mxu0 %v372
    %v417 = vpop.f32.mrb[0].mxu0
    %v418 = vadd.f32 %v357, %v417
    %v419 = vpop.f32.mrb[0].mxu0
    %v420 = vpop.f32.mrb[0].mxu0
    %v421 = vadd.f32 %v357, %v420
    %v422 = vpop.f32.mrb[0].mxu0
    %423 = vmatprep.mubr.bf16.mxu0 0
    %424 = vmatmul.mubr.bf16.gmra.mrb[0].mxu0 %v375
    %v425 = vpop.f32.mrb[0].mxu0
    %v426 = vadd.f32 %v357, %v425
    %v427 = vpop.f32.mrb[0].mxu0
    %v428 = vpop.f32.mrb[0].mxu0
    %v429 = vadd.f32 %v357, %v428
    %v430 = vpop.f32.mrb[0].mxu0
    %431 = vmatprep.mubr.bf16.mxu0 0
    %432 = vmatmul.mubr.bf16.gmra.mrb[0].mxu0 %v378
    %v433 = vpop.f32.mrb[0].mxu0
    %v434 = vadd.f32 %v357, %v433
    %v435 = vpop.f32.mrb[0].mxu0
    %v436 = vpop.f32.mrb[0].mxu0
    %v437 = vadd.f32 %v357, %v436
    %v438 = vpop.f32.mrb[0].mxu0
    %439 = vmatprep.mubr.bf16.mxu0 0
    %440 = vmatmul.mubr.bf16.gmra.mrb[0].mxu0 %v381
    %v441 = vpop.f32.mrb[0].mxu0
    %v442 = vadd.f32 %v357, %v441
    %v443 = vpop.f32.mrb[0].mxu0
    %v444 = vpop.f32.mrb[0].mxu0
    %v445 = vadd.f32 %v357, %v444
    %v446 = vpop.f32.mrb[0].mxu0
    %447 = vdwg.mxu0
    %v448 = vld [vmem:[%s6] sm:$0xf]
    %v449 = vld [vmem:[%s6 + $0x4] sm:$0xf]
    %v450 = vld [vmem:[%s6 + $0x8] sm:$0xf]
    %v451 = vld [vmem:[%s6 + $0xc] sm:$0xf]
    %v452 = vld [vmem:[%s7] sm:$0xf]
    %v453 = vld [vmem:[%s7 + $0x4] sm:$0xf]
    %v454 = vld [vmem:[%s7 + $0x8] sm:$0xf]
    %v455 = vld [vmem:[%s7 + $0xc] sm:$0xf]
    %v456 = vld [vmem:[#allocation11] sm:$0xf]
    %v457 = vld [vmem:[#allocation11 + $0x4] sm:$0xf]
    %v458 = vld [vmem:[#allocation11 + $0x8] sm:$0xf]
    %v459 = vld [vmem:[#allocation11 + $0xc] sm:$0xf]
    %v460 = vld [vmem:[#allocation13] sm:$0x1]
    %v461 = vld [vmem:[%s10] sm:$0x1]
    %v462 = vld [vmem:[%s11] sm:$0x1]
    %v464 = vlaneseq
    %v465 = vshrl.u32 %v464, 7
    %v466 = vsub.s32 0, %v465
    %v467 = vrot.slane %v460, %v466
    %v473 = vunpack.c.l.b16 %v448
    %v474 = vunpack.c.l.b16 %v449
    %v475 = vunpack.c.l.b16 %v450
    %v476 = vunpack.c.l.b16 %v451
    %v477 = vpack.c.b16 %v474, %v473
    %v478 = vpack.c.b16 %v476, %v475
    %v482 = vsel %vm117, 0, 0
    %484 = vmatprep.subr.bf16.mxu0 0
    %485 = vmatpush1.bf16.msra.mxu0 %v477
    %486 = vmatprep.subr.bf16.mxu0 0
    %487 = vmatpush1.bf16.msra.mxu0 %v478
    %488 = vmatprep.subr.bf16.mxu0 0
    %489 = vmatpush1.bf16.msra.mxu0 0
    %490 = vmatprep.subr.bf16.mxu0 0
    %491 = vmatpush1.bf16.msra.mxu0 0
    %492 = vmatprep.subr.bf16.mxu0 0
    %493 = vmatpush1.bf16.msra.mxu0 0
    %494 = vmatprep.subr.bf16.mxu0 0
    %495 = vmatpush1.bf16.msra.mxu0 0
    %496 = vmatprep.subr.bf16.mxu0 0
    %497 = vmatpush1.bf16.msra.mxu0 0
    %498 = vmatprep.subr.bf16.mxu0 0
    %499 = vmatpush1.bf16.msra.mxu0 0
    %500 = vmatprep.subr.bf16.mxu0 0
    %501 = vmatpush1.bf16.msra.mxu0 0
    %502 = vmatprep.subr.bf16.mxu0 0
    %503 = vmatpush1.bf16.msra.mxu0 0
    %504 = vmatprep.subr.bf16.mxu0 0
    %505 = vmatpush1.bf16.msra.mxu0 0
    %506 = vmatprep.subr.bf16.mxu0 0
    %507 = vmatpush1.bf16.msra.mxu0 0
    %508 = vmatprep.subr.bf16.mxu0 0
    %509 = vmatpush1.bf16.msra.mxu0 0
    %510 = vmatprep.subr.bf16.mxu0 0
    %511 = vmatpush1.bf16.msra.mxu0 0
    %512 = vmatprep.subr.bf16.mxu0 0
    %513 = vmatpush1.bf16.msra.mxu0 0
    %514 = vmatprep.subr.bf16.mxu0 0
    %515 = vmatpush1.bf16.msra.mxu0 0
    %516 = vmatprep.mubr.bf16.mxu0 0
    %517 = vmatmul.mubr.bf16.gmra.mrb[0].mxu0 %v482
    %v518 = vpop.f32.mrb[0].mxu0
    %v519 = vadd.f32 %v467, %v518
    %v520 = vpop.f32.mrb[0].mxu0
    %v521 = vpop.f32.mrb[0].mxu0
    %v522 = vpop.f32.mrb[0].mxu0
    %523 = vdwg.mxu0
    %v525 = vlaneseq
    %v526 = vshrl.u32 %v525, 7
    %v527 = vsub.s32 0, %v526
    %v528 = vrot.slane %v461, %v527
    %v534 = vunpack.c.l.b16 %v452
    %v535 = vunpack.c.l.b16 %v453
    %v536 = vunpack.c.l.b16 %v454
    %v537 = vunpack.c.l.b16 %v455
    %v538 = vpack.c.b16 %v535, %v534
    %v539 = vpack.c.b16 %v537, %v536
    %542 = vmatprep.subr.bf16.mxu0 0
    %543 = vmatpush1.bf16.msra.mxu0 %v538
    %544 = vmatprep.subr.bf16.mxu0 0
    %545 = vmatpush1.bf16.msra.mxu0 %v539
    %546 = vmatprep.subr.bf16.mxu0 0
    %547 = vmatpush1.bf16.msra.mxu0 0
    %548 = vmatprep.subr.bf16.mxu0 0
    %549 = vmatpush1.bf16.msra.mxu0 0
    %550 = vmatprep.subr.bf16.mxu0 0
    %551 = vmatpush1.bf16.msra.mxu0 0
    %552 = vmatprep.subr.bf16.mxu0 0
    %553 = vmatpush1.bf16.msra.mxu0 0
    %554 = vmatprep.subr.bf16.mxu0 0
    %555 = vmatpush1.bf16.msra.mxu0 0
    %556 = vmatprep.subr.bf16.mxu0 0
    %557 = vmatpush1.bf16.msra.mxu0 0
    %558 = vmatprep.subr.bf16.mxu0 0
    %559 = vmatpush1.bf16.msra.mxu0 0
    %560 = vmatprep.subr.bf16.mxu0 0
    %561 = vmatpush1.bf16.msra.mxu0 0
    %562 = vmatprep.subr.bf16.mxu0 0
    %563 = vmatpush1.bf16.msra.mxu0 0
    %564 = vmatprep.subr.bf16.mxu0 0
    %565 = vmatpush1.bf16.msra.mxu0 0
    %566 = vmatprep.subr.bf16.mxu0 0
    %567 = vmatpush1.bf16.msra.mxu0 0
    %568 = vmatprep.subr.bf16.mxu0 0
    %569 = vmatpush1.bf16.msra.mxu0 0
    %570 = vmatprep.subr.bf16.mxu0 0
    %571 = vmatpush1.bf16.msra.mxu0 0
    %572 = vmatprep.subr.bf16.mxu0 0
    %573 = vmatpush1.bf16.msra.mxu0 0
    %574 = vmatprep.mubr.bf16.mxu0 0
    %575 = vmatmul.mubr.bf16.gmra.mrb[0].mxu0 %v482
    %v576 = vpop.f32.mrb[0].mxu0
    %v577 = vadd.f32 %v528, %v576
    %v578 = vpop.f32.mrb[0].mxu0
    %v579 = vpop.f32.mrb[0].mxu0
    %v580 = vpop.f32.mrb[0].mxu0
    %581 = vdwg.mxu0
    %v583 = vlaneseq
    %v584 = vshrl.u32 %v583, 7
    %v585 = vsub.s32 0, %v584
    %v586 = vrot.slane %v462, %v585
    %v592 = vunpack.c.l.b16 %v456
    %v593 = vunpack.c.l.b16 %v457
    %v594 = vunpack.c.l.b16 %v458
    %v595 = vunpack.c.l.b16 %v459
    %v596 = vpack.c.b16 %v593, %v592
    %v597 = vpack.c.b16 %v595, %v594
    %600 = vmatprep.subr.bf16.mxu0 0
    %601 = vmatpush1.bf16.msra.mxu0 %v596
    %602 = vmatprep.subr.bf16.mxu0 0
    %603 = vmatpush1.bf16.msra.mxu0 %v597
    %604 = vmatprep.subr.bf16.mxu0 0
    %605 = vmatpush1.bf16.msra.mxu0 0
    %606 = vmatprep.subr.bf16.mxu0 0
    %607 = vmatpush1.bf16.msra.mxu0 0
    %608 = vmatprep.subr.bf16.mxu0 0
    %609 = vmatpush1.bf16.msra.mxu0 0
    %610 = vmatprep.subr.bf16.mxu0 0
    %611 = vmatpush1.bf16.msra.mxu0 0
    %612 = vmatprep.subr.bf16.mxu0 0
    %613 = vmatpush1.bf16.msra.mxu0 0
    %614 = vmatprep.subr.bf16.mxu0 0
    %615 = vmatpush1.bf16.msra.mxu0 0
    %616 = vmatprep.subr.bf16.mxu0 0
    %617 = vmatpush1.bf16.msra.mxu0 0
    %618 = vmatprep.subr.bf16.mxu0 0
    %619 = vmatpush1.bf16.msra.mxu0 0
    %620 = vmatprep.subr.bf16.mxu0 0
    %621 = vmatpush1.bf16.msra.mxu0 0
    %622 = vmatprep.subr.bf16.mxu0 0
    %623 = vmatpush1.bf16.msra.mxu0 0
    %624 = vmatprep.subr.bf16.mxu0 0
    %625 = vmatpush1.bf16.msra.mxu0 0
    %626 = vmatprep.subr.bf16.mxu0 0
    %627 = vmatpush1.bf16.msra.mxu0 0
    %628 = vmatprep.subr.bf16.mxu0 0
    %629 = vmatpush1.bf16.msra.mxu0 0
    %630 = vmatprep.subr.bf16.mxu0 0
    %631 = vmatpush1.bf16.msra.mxu0 0
    %632 = vmatprep.mubr.bf16.mxu0 0
    %633 = vmatmul.mubr.bf16.gmra.mrb[0].mxu0 %v482
    %v634 = vpop.f32.mrb[0].mxu0
    %v635 = vadd.f32 %v586, %v634
    %v636 = vpop.f32.mrb[0].mxu0
    %v637 = vpop.f32.mrb[0].mxu0
    %v638 = vpop.f32.mrb[0].mxu0
    %639 = vdwg.mxu0
    %v640 = vadd.f32 %v418, %v519
    %v641 = vxor.u32 %v640, 2147483648
    %v642 = vmul.f32 %v641, 1.442695
    %v643 = vpow.pop %v642
    %v644 = vadd.f32 %v643, 1.0
    %v645 = vrcp.pop %v644
    %v646 = vmul.f32 1.0, %v645
    %648 = vrot.lane.b32.xlu0 %v577, 32
    %v649 = vpop.permute.xlu0 %648
    %v651 = vadd.f32 %v418, %v649
    %v652 = vxor.u32 %v651, 2147483648
    %v653 = vmul.f32 %v652, 1.442695
    %v654 = vpow.pop %v653
    %v655 = vadd.f32 %v654, 1.0
    %v656 = vrcp.pop %v655
    %v657 = vmul.f32 1.0, %v656
    %v658 = vmul.f32 %v646, %v635
    %660 = vrot.lane.b32.xlu0 %v658, 64
    %v661 = vpop.permute.xlu0 %660
    %v663 = vadd.f32 %v418, %v661
    %v664 = vtanh.pop %v663
    %v665 = vsub.f32 1.0, %v657
    %667 = vrot.lane.b32.xlu0 %v664, 96
    %v668 = vpop.permute.xlu0 %667
    %v670 = vmul.f32 %v665, %v668
    %v671 = vmul.f32 %v657, 0.0
    %v672 = vadd.f32 %v670, %v671
    %v673 = vadd.f32 %v672, 0.0
    %v674 = vpack.c.bf16 %v672, %v672
    %676 = vrot.lane.b32.xlu0 %v674, 96
    %v677 = vpop.permute.xlu0 %676
    %v679 = vsel %vm117, %v677, 0
    %681 = vmatprep.subr.bf16.mxu0 0
    %682 = vmatpush1.bf16.msra.mxu0 %v477
    %683 = vmatprep.subr.bf16.mxu0 0
    %684 = vmatpush1.bf16.msra.mxu0 %v478
    %685 = vmatprep.subr.bf16.mxu0 0
    %686 = vmatpush1.bf16.msra.mxu0 0
    %687 = vmatprep.subr.bf16.mxu0 0
    %688 = vmatpush1.bf16.msra.mxu0 0
    %689 = vmatprep.subr.bf16.mxu0 0
    %690 = vmatpush1.bf16.msra.mxu0 0
    %691 = vmatprep.subr.bf16.mxu0 0
    %692 = vmatpush1.bf16.msra.mxu0 0
    %693 = vmatprep.subr.bf16.mxu0 0
    %694 = vmatpush1.bf16.msra.mxu0 0
    %695 = vmatprep.subr.bf16.mxu0 0
    %696 = vmatpush1.bf16.msra.mxu0 0
    %697 = vmatprep.subr.bf16.mxu0 0
    %698 = vmatpush1.bf16.msra.mxu0 0
    %699 = vmatprep.subr.bf16.mxu0 0
    %700 = vmatpush1.bf16.msra.mxu0 0
    %701 = vmatprep.subr.bf16.mxu0 0
    %702 = vmatpush1.bf16.msra.mxu0 0
    %703 = vmatprep.subr.bf16.mxu0 0
    %704 = vmatpush1.bf16.msra.mxu0 0
    %705 = vmatprep.subr.bf16.mxu0 0
    %706 = vmatpush1.bf16.msra.mxu0 0
    %707 = vmatprep.subr.bf16.mxu0 0
    %708 = vmatpush1.bf16.msra.mxu0 0
    %709 = vmatprep.subr.bf16.mxu0 0
    %710 = vmatpush1.bf16.msra.mxu0 0
    %711 = vmatprep.subr.bf16.mxu0 0
    %712 = vmatpush1.bf16.msra.mxu0 0
    %713 = vmatprep.mubr.bf16.mxu0 0
    %714 = vmatmul.mubr.bf16.gmra.mrb[0].mxu0 %v679
    %v715 = vpop.f32.mrb[0].mxu0
    %v716 = vadd.f32 %v467, %v715
    %v717 = vpop.f32.mrb[0].mxu0
    %v718 = vpop.f32.mrb[0].mxu0
    %v719 = vpop.f32.mrb[0].mxu0
    %720 = vdwg.mxu0
    %721 = vmatprep.subr.bf16.mxu0 0
    %722 = vmatpush1.bf16.msra.mxu0 %v538
    %723 = vmatprep.subr.bf16.mxu0 0
    %724 = vmatpush1.bf16.msra.mxu0 %v539
    %725 = vmatprep.subr.bf16.mxu0 0
    %726 = vmatpush1.bf16.msra.mxu0 0
    %727 = vmatprep.subr.bf16.mxu0 0
    %728 = vmatpush1.bf16.msra.mxu0 0
    %729 = vmatprep.subr.bf16.mxu0 0
    %730 = vmatpush1.bf16.msra.mxu0 0
    %731 = vmatprep.subr.bf16.mxu0 0
    %732 = vmatpush1.bf16.msra.mxu0 0
    %733 = vmatprep.subr.bf16.mxu0 0
    %734 = vmatpush1.bf16.msra.mxu0 0
    %735 = vmatprep.subr.bf16.mxu0 0
    %736 = vmatpush1.bf16.msra.mxu0 0
    %737 = vmatprep.subr.bf16.mxu0 0
    %738 = vmatpush1.bf16.msra.mxu0 0
    %739 = vmatprep.subr.bf16.mxu0 0
    %740 = vmatpush1.bf16.msra.mxu0 0
    %741 = vmatprep.subr.bf16.mxu0 0
    %742 = vmatpush1.bf16.msra.mxu0 0
    %743 = vmatprep.subr.bf16.mxu0 0
    %744 = vmatpush1.bf16.msra.mxu0 0
    %745 = vmatprep.subr.bf16.mxu0 0
    %746 = vmatpush1.bf16.msra.mxu0 0
    %747 = vmatprep.subr.bf16.mxu0 0
    %748 = vmatpush1.bf16.msra.mxu0 0
    %749 = vmatprep.subr.bf16.mxu0 0
    %750 = vmatpush1.bf16.msra.mxu0 0
    %751 = vmatprep.subr.bf16.mxu0 0
    %752 = vmatpush1.bf16.msra.mxu0 0
    %753 = vmatprep.mubr.bf16.mxu0 0
    %754 = vmatmul.mubr.bf16.gmra.mrb[0].mxu0 %v679
    %v755 = vpop.f32.mrb[0].mxu0
    %v756 = vadd.f32 %v528, %v755
    %v757 = vpop.f32.mrb[0].mxu0
    %v758 = vpop.f32.mrb[0].mxu0
    %v759 = vpop.f32.mrb[0].mxu0
    %760 = vdwg.mxu0
    %761 = vmatprep.subr.bf16.mxu0 0
    %762 = vmatpush1.bf16.msra.mxu0 %v596
    %763 = vmatprep.subr.bf16.mxu0 0
    %764 = vmatpush1.bf16.msra.mxu0 %v597
    %765 = vmatprep.subr.bf16.mxu0 0
    %766 = vmatpush1.bf16.msra.mxu0 0
    %767 = vmatprep.subr.bf16.mxu0 0
    %768 = vmatpush1.bf16.msra.mxu0 0
    %769 = vmatprep.subr.bf16.mxu0 0
    %770 = vmatpush1.bf16.msra.mxu0 0
    %771 = vmatprep.subr.bf16.mxu0 0
    %772 = vmatpush1.bf16.msra.mxu0 0
    %773 = vmatprep.subr.bf16.mxu0 0
    %774 = vmatpush1.bf16.msra.mxu0 0
    %775 = vmatprep.subr.bf16.mxu0 0
    %776 = vmatpush1.bf16.msra.mxu0 0
    %777 = vmatprep.subr.bf16.mxu0 0
    %778 = vmatpush1.bf16.msra.mxu0 0
    %779 = vmatprep.subr.bf16.mxu0 0
    %780 = vmatpush1.bf16.msra.mxu0 0
    %781 = vmatprep.subr.bf16.mxu0 0
    %782 = vmatpush1.bf16.msra.mxu0 0
    %783 = vmatprep.subr.bf16.mxu0 0
    %784 = vmatpush1.bf16.msra.mxu0 0
    %785 = vmatprep.subr.bf16.mxu0 0
    %786 = vmatpush1.bf16.msra.mxu0 0
    %787 = vmatprep.subr.bf16.mxu0 0
    %788 = vmatpush1.bf16.msra.mxu0 0
    %789 = vmatprep.subr.bf16.mxu0 0
    %790 = vmatpush1.bf16.msra.mxu0 0
    %791 = vmatprep.subr.bf16.mxu0 0
    %792 = vmatpush1.bf16.msra.mxu0 0
    %793 = vmatprep.mubr.bf16.mxu0 0
    %794 = vmatmul.mubr.bf16.gmra.mrb[0].mxu0 %v679
    %v795 = vpop.f32.mrb[0].mxu0
    %v796 = vadd.f32 %v586, %v795
    %v797 = vpop.f32.mrb[0].mxu0
    %v798 = vpop.f32.mrb[0].mxu0
    %v799 = vpop.f32.mrb[0].mxu0
    %800 = vdwg.mxu0
    %v801 = vadd.f32 %v421, %v716
    %v802 = vxor.u32 %v801, 2147483648
    %v803 = vmul.f32 %v802, 1.442695
    %v804 = vpow.pop %v803
    %v805 = vadd.f32 %v804, 1.0
    %v806 = vrcp.pop %v805
    %v807 = vmul.f32 1.0, %v806
    %809 = vrot.lane.b32.xlu0 %v756, 32
    %v810 = vpop.permute.xlu0 %809
    %v812 = vadd.f32 %v421, %v810
    %v813 = vxor.u32 %v812, 2147483648
    %v814 = vmul.f32 %v813, 1.442695
    %v815 = vpow.pop %v814
    %v816 = vadd.f32 %v815, 1.0
    %v817 = vrcp.pop %v816
    %v818 = vmul.f32 1.0, %v817
    %v819 = vmul.f32 %v807, %v796
    %821 = vrot.lane.b32.xlu0 %v819, 64
    %v822 = vpop.permute.xlu0 %821
    %v824 = vadd.f32 %v421, %v822
    %v825 = vtanh.pop %v824
    %v826 = vsub.f32 1.0, %v818
    %828 = vrot.lane.b32.xlu0 %v825, 96
    %v829 = vpop.permute.xlu0 %828
    %v831 = vmul.f32 %v826, %v829
    %v832 = vmul.f32 %v818, %v672
    %v833 = vadd.f32 %v831, %v832
    %v834 = vadd.f32 %v673, %v833
    %v835 = vpack.c.bf16 %v833, %v833
    %837 = vrot.lane.b32.xlu0 %v835, 96
    %v838 = vpop.permute.xlu0 %837
    %v840 = vsel %vm117, %v838, 0
    %842 = vmatprep.subr.bf16.mxu0 0
    %843 = vmatpush1.bf16.msra.mxu0 %v477
    %844 = vmatprep.subr.bf16.mxu0 0
    %845 = vmatpush1.bf16.msra.mxu0 %v478
    %846 = vmatprep.subr.bf16.mxu0 0
    %847 = vmatpush1.bf16.msra.mxu0 0
    %848 = vmatprep.subr.bf16.mxu0 0
    %849 = vmatpush1.bf16.msra.mxu0 0
    %850 = vmatprep.subr.bf16.mxu0 0
    %851 = vmatpush1.bf16.msra.mxu0 0
    %852 = vmatprep.subr.bf16.mxu0 0
    %853 = vmatpush1.bf16.msra.mxu0 0
    %854 = vmatprep.subr.bf16.mxu0 0
    %855 = vmatpush1.bf16.msra.mxu0 0
    %856 = vmatprep.subr.bf16.mxu0 0
    %857 = vmatpush1.bf16.msra.mxu0 0
    %858 = vmatprep.subr.bf16.mxu0 0
    %859 = vmatpush1.bf16.msra.mxu0 0
    %860 = vmatprep.subr.bf16.mxu0 0
    %861 = vmatpush1.bf16.msra.mxu0 0
    %862 = vmatprep.subr.bf16.mxu0 0
    %863 = vmatpush1.bf16.msra.mxu0 0
    %864 = vmatprep.subr.bf16.mxu0 0
    %865 = vmatpush1.bf16.msra.mxu0 0
    %866 = vmatprep.subr.bf16.mxu0 0
    %867 = vmatpush1.bf16.msra.mxu0 0
    %868 = vmatprep.subr.bf16.mxu0 0
    %869 = vmatpush1.bf16.msra.mxu0 0
    %870 = vmatprep.subr.bf16.mxu0 0
    %871 = vmatpush1.bf16.msra.mxu0 0
    %872 = vmatprep.subr.bf16.mxu0 0
    %873 = vmatpush1.bf16.msra.mxu0 0
    %874 = vmatprep.mubr.bf16.mxu0 0
    %875 = vmatmul.mubr.bf16.gmra.mrb[0].mxu0 %v840
    %v876 = vpop.f32.mrb[0].mxu0
    %v877 = vadd.f32 %v467, %v876
    %v878 = vpop.f32.mrb[0].mxu0
    %v879 = vpop.f32.mrb[0].mxu0
    %v880 = vpop.f32.mrb[0].mxu0
    %881 = vdwg.mxu0
    %882 = vmatprep.subr.bf16.mxu0 0
    %883 = vmatpush1.bf16.msra.mxu0 %v538
    %884 = vmatprep.subr.bf16.mxu0 0
    %885 = vmatpush1.bf16.msra.mxu0 %v539
    %886 = vmatprep.subr.bf16.mxu0 0
    %887 = vmatpush1.bf16.msra.mxu0 0
    %888 = vmatprep.subr.bf16.mxu0 0
    %889 = vmatpush1.bf16.msra.mxu0 0
    %890 = vmatprep.subr.bf16.mxu0 0
    %891 = vmatpush1.bf16.msra.mxu0 0
    %892 = vmatprep.subr.bf16.mxu0 0
    %893 = vmatpush1.bf16.msra.mxu0 0
    %894 = vmatprep.subr.bf16.mxu0 0
    %895 = vmatpush1.bf16.msra.mxu0 0
    %896 = vmatprep.subr.bf16.mxu0 0
    %897 = vmatpush1.bf16.msra.mxu0 0
    %898 = vmatprep.subr.bf16.mxu0 0
    %899 = vmatpush1.bf16.msra.mxu0 0
    %900 = vmatprep.subr.bf16.mxu0 0
    %901 = vmatpush1.bf16.msra.mxu0 0
    %902 = vmatprep.subr.bf16.mxu0 0
    %903 = vmatpush1.bf16.msra.mxu0 0
    %904 = vmatprep.subr.bf16.mxu0 0
    %905 = vmatpush1.bf16.msra.mxu0 0
    %906 = vmatprep.subr.bf16.mxu0 0
    %907 = vmatpush1.bf16.msra.mxu0 0
    %908 = vmatprep.subr.bf16.mxu0 0
    %909 = vmatpush1.bf16.msra.mxu0 0
    %910 = vmatprep.subr.bf16.mxu0 0
    %911 = vmatpush1.bf16.msra.mxu0 0
    %912 = vmatprep.subr.bf16.mxu0 0
    %913 = vmatpush1.bf16.msra.mxu0 0
    %914 = vmatprep.mubr.bf16.mxu0 0
    %915 = vmatmul.mubr.bf16.gmra.mrb[0].mxu0 %v840
    %v916 = vpop.f32.mrb[0].mxu0
    %v917 = vadd.f32 %v528, %v916
    %v918 = vpop.f32.mrb[0].mxu0
    %v919 = vpop.f32.mrb[0].mxu0
    %v920 = vpop.f32.mrb[0].mxu0
    %921 = vdwg.mxu0
    %922 = vmatprep.subr.bf16.mxu0 0
    %923 = vmatpush1.bf16.msra.mxu0 %v596
    %924 = vmatprep.subr.bf16.mxu0 0
    %925 = vmatpush1.bf16.msra.mxu0 %v597
    %926 = vmatprep.subr.bf16.mxu0 0
    %927 = vmatpush1.bf16.msra.mxu0 0
    %928 = vmatprep.subr.bf16.mxu0 0
    %929 = vmatpush1.bf16.msra.mxu0 0
    %930 = vmatprep.subr.bf16.mxu0 0
    %931 = vmatpush1.bf16.msra.mxu0 0
    %932 = vmatprep.subr.bf16.mxu0 0
    %933 = vmatpush1.bf16.msra.mxu0 0
    %934 = vmatprep.subr.bf16.mxu0 0
    %935 = vmatpush1.bf16.msra.mxu0 0
    %936 = vmatprep.subr.bf16.mxu0 0
    %937 = vmatpush1.bf16.msra.mxu0 0
    %938 = vmatprep.subr.bf16.mxu0 0
    %939 = vmatpush1.bf16.msra.mxu0 0
    %940 = vmatprep.subr.bf16.mxu0 0
    %941 = vmatpush1.bf16.msra.mxu0 0
    %942 = vmatprep.subr.bf16.mxu0 0
    %943 = vmatpush1.bf16.msra.mxu0 0
    %944 = vmatprep.subr.bf16.mxu0 0
    %945 = vmatpush1.bf16.msra.mxu0 0
    %946 = vmatprep.subr.bf16.mxu0 0
    %947 = vmatpush1.bf16.msra.mxu0 0
    %948 = vmatprep.subr.bf16.mxu0 0
    %949 = vmatpush1.bf16.msra.mxu0 0
    %950 = vmatprep.subr.bf16.mxu0 0
    %951 = vmatpush1.bf16.msra.mxu0 0
    %952 = vmatprep.subr.bf16.mxu0 0
    %953 = vmatpush1.bf16.msra.mxu0 0
    %954 = vmatprep.mubr.bf16.mxu0 0
    %955 = vmatmul.mubr.bf16.gmra.mrb[0].mxu0 %v840
    %v956 = vpop.f32.mrb[0].mxu0
    %v957 = vadd.f32 %v586, %v956
    %v958 = vpop.f32.mrb[0].mxu0
    %v959 = vpop.f32.mrb[0].mxu0
    %v960 = vpop.f32.mrb[0].mxu0
    %961 = vdwg.mxu0
    %v962 = vadd.f32 %v426, %v877
    %v963 = vxor.u32 %v962, 2147483648
    %v964 = vmul.f32 %v963, 1.442695
    %v965 = vpow.pop %v964
    %v966 = vadd.f32 %v965, 1.0
    %v967 = vrcp.pop %v966
    %v968 = vmul.f32 1.0, %v967
    %970 = vrot.lane.b32.xlu0 %v917, 32
    %v971 = vpop.permute.xlu0 %970
    %v973 = vadd.f32 %v426, %v971
    %v974 = vxor.u32 %v973, 2147483648
    %v975 = vmul.f32 %v974, 1.442695
    %v976 = vpow.pop %v975
    %v977 = vadd.f32 %v976, 1.0
    %v978 = vrcp.pop %v977
    %v979 = vmul.f32 1.0, %v978
    %v980 = vmul.f32 %v968, %v957
    %982 = vrot.lane.b32.xlu0 %v980, 64
    %v983 = vpop.permute.xlu0 %982
    %v985 = vadd.f32 %v426, %v983
    %v986 = vtanh.pop %v985
    %v987 = vsub.f32 1.0, %v979
    %989 = vrot.lane.b32.xlu0 %v986, 96
    %v990 = vpop.permute.xlu0 %989
    %v992 = vmul.f32 %v987, %v990
    %v993 = vmul.f32 %v979, %v833
    %v994 = vadd.f32 %v992, %v993
    %v995 = vadd.f32 %v834, %v994
    %v996 = vpack.c.bf16 %v994, %v994
    %998 = vrot.lane.b32.xlu0 %v996, 96
    %v999 = vpop.permute.xlu0 %998
    %v1001 = vsel %vm117, %v999, 0
    %1003 = vmatprep.subr.bf16.mxu0 0
    %1004 = vmatpush1.bf16.msra.mxu0 %v477
    %1005 = vmatprep.subr.bf16.mxu0 0
    %1006 = vmatpush1.bf16.msra.mxu0 %v478
    %1007 = vmatprep.subr.bf16.mxu0 0
    %1008 = vmatpush1.bf16.msra.mxu0 0
    %1009 = vmatprep.subr.bf16.mxu0 0
    %1010 = vmatpush1.bf16.msra.mxu0 0
    %1011 = vmatprep.subr.bf16.mxu0 0
    %1012 = vmatpush1.bf16.msra.mxu0 0
    %1013 = vmatprep.subr.bf16.mxu0 0
    %1014 = vmatpush1.bf16.msra.mxu0 0
    %1015 = vmatprep.subr.bf16.mxu0 0
    %1016 = vmatpush1.bf16.msra.mxu0 0
    %1017 = vmatprep.subr.bf16.mxu0 0
    %1018 = vmatpush1.bf16.msra.mxu0 0
    %1019 = vmatprep.subr.bf16.mxu0 0
    %1020 = vmatpush1.bf16.msra.mxu0 0
    %1021 = vmatprep.subr.bf16.mxu0 0
    %1022 = vmatpush1.bf16.msra.mxu0 0
    %1023 = vmatprep.subr.bf16.mxu0 0
    %1024 = vmatpush1.bf16.msra.mxu0 0
    %1025 = vmatprep.subr.bf16.mxu0 0
    %1026 = vmatpush1.bf16.msra.mxu0 0
    %1027 = vmatprep.subr.bf16.mxu0 0
    %1028 = vmatpush1.bf16.msra.mxu0 0
    %1029 = vmatprep.subr.bf16.mxu0 0
    %1030 = vmatpush1.bf16.msra.mxu0 0
    %1031 = vmatprep.subr.bf16.mxu0 0
    %1032 = vmatpush1.bf16.msra.mxu0 0
    %1033 = vmatprep.subr.bf16.mxu0 0
    %1034 = vmatpush1.bf16.msra.mxu0 0
    %1035 = vmatprep.mubr.bf16.mxu0 0
    %1036 = vmatmul.mubr.bf16.gmra.mrb[0].mxu0 %v1001
    %v1037 = vpop.f32.mrb[0].mxu0
    %v1038 = vadd.f32 %v467, %v1037
    %v1039 = vpop.f32.mrb[0].mxu0
    %v1040 = vpop.f32.mrb[0].mxu0
    %v1041 = vpop.f32.mrb[0].mxu0
    %1042 = vdwg.mxu0
    %1043 = vmatprep.subr.bf16.mxu0 0
    %1044 = vmatpush1.bf16.msra.mxu0 %v538
    %1045 = vmatprep.subr.bf16.mxu0 0
    %1046 = vmatpush1.bf16.msra.mxu0 %v539
    %1047 = vmatprep.subr.bf16.mxu0 0
    %1048 = vmatpush1.bf16.msra.mxu0 0
    %1049 = vmatprep.subr.bf16.mxu0 0
    %1050 = vmatpush1.bf16.msra.mxu0 0
    %1051 = vmatprep.subr.bf16.mxu0 0
    %1052 = vmatpush1.bf16.msra.mxu0 0
    %1053 = vmatprep.subr.bf16.mxu0 0
    %1054 = vmatpush1.bf16.msra.mxu0 0
    %1055 = vmatprep.subr.bf16.mxu0 0
    %1056 = vmatpush1.bf16.msra.mxu0 0
    %1057 = vmatprep.subr.bf16.mxu0 0
    %1058 = vmatpush1.bf16.msra.mxu0 0
    %1059 = vmatprep.subr.bf16.mxu0 0
    %1060 = vmatpush1.bf16.msra.mxu0 0
    %1061 = vmatprep.subr.bf16.mxu0 0
    %1062 = vmatpush1.bf16.msra.mxu0 0
    %1063 = vmatprep.subr.bf16.mxu0 0
    %1064 = vmatpush1.bf16.msra.mxu0 0
    %1065 = vmatprep.subr.bf16.mxu0 0
    %1066 = vmatpush1.bf16.msra.mxu0 0
    %1067 = vmatprep.subr.bf16.mxu0 0
    %1068 = vmatpush1.bf16.msra.mxu0 0
    %1069 = vmatprep.subr.bf16.mxu0 0
    %1070 = vmatpush1.bf16.msra.mxu0 0
    %1071 = vmatprep.subr.bf16.mxu0 0
    %1072 = vmatpush1.bf16.msra.mxu0 0
    %1073 = vmatprep.subr.bf16.mxu0 0
    %1074 = vmatpush1.bf16.msra.mxu0 0
    %1075 = vmatprep.mubr.bf16.mxu0 0
    %1076 = vmatmul.mubr.bf16.gmra.mrb[0].mxu0 %v1001
    %v1077 = vpop.f32.mrb[0].mxu0
    %v1078 = vadd.f32 %v528, %v1077
    %v1079 = vpop.f32.mrb[0].mxu0
    %v1080 = vpop.f32.mrb[0].mxu0
    %v1081 = vpop.f32.mrb[0].mxu0
    %1082 = vdwg.mxu0
    %1083 = vmatprep.subr.bf16.mxu0 0
    %1084 = vmatpush1.bf16.msra.mxu0 %v596
    %1085 = vmatprep.subr.bf16.mxu0 0
    %1086 = vmatpush1.bf16.msra.mxu0 %v597
    %1087 = vmatprep.subr.bf16.mxu0 0
    %1088 = vmatpush1.bf16.msra.mxu0 0
    %1089 = vmatprep.subr.bf16.mxu0 0
    %1090 = vmatpush1.bf16.msra.mxu0 0
    %1091 = vmatprep.subr.bf16.mxu0 0
    %1092 = vmatpush1.bf16.msra.mxu0 0
    %1093 = vmatprep.subr.bf16.mxu0 0
    %1094 = vmatpush1.bf16.msra.mxu0 0
    %1095 = vmatprep.subr.bf16.mxu0 0
    %1096 = vmatpush1.bf16.msra.mxu0 0
    %1097 = vmatprep.subr.bf16.mxu0 0
    %1098 = vmatpush1.bf16.msra.mxu0 0
    %1099 = vmatprep.subr.bf16.mxu0 0
    %1100 = vmatpush1.bf16.msra.mxu0 0
    %1101 = vmatprep.subr.bf16.mxu0 0
    %1102 = vmatpush1.bf16.msra.mxu0 0
    %1103 = vmatprep.subr.bf16.mxu0 0
    %1104 = vmatpush1.bf16.msra.mxu0 0
    %1105 = vmatprep.subr.bf16.mxu0 0
    %1106 = vmatpush1.bf16.msra.mxu0 0
    %1107 = vmatprep.subr.bf16.mxu0 0
    %1108 = vmatpush1.bf16.msra.mxu0 0
    %1109 = vmatprep.subr.bf16.mxu0 0
    %1110 = vmatpush1.bf16.msra.mxu0 0
    %1111 = vmatprep.subr.bf16.mxu0 0
    %1112 = vmatpush1.bf16.msra.mxu0 0
    %1113 = vmatprep.subr.bf16.mxu0 0
    %1114 = vmatpush1.bf16.msra.mxu0 0
    %1115 = vmatprep.mubr.bf16.mxu0 0
    %1116 = vmatmul.mubr.bf16.gmra.mrb[0].mxu0 %v1001
    %v1117 = vpop.f32.mrb[0].mxu0
    %v1118 = vadd.f32 %v586, %v1117
    %v1119 = vpop.f32.mrb[0].mxu0
    %v1120 = vpop.f32.mrb[0].mxu0
    %v1121 = vpop.f32.mrb[0].mxu0
    %1122 = vdwg.mxu0
    %v1123 = vadd.f32 %v429, %v1038
    %v1124 = vxor.u32 %v1123, 2147483648
    %v1125 = vmul.f32 %v1124, 1.442695
    %v1126 = vpow.pop %v1125
    %v1127 = vadd.f32 %v1126, 1.0
    %v1128 = vrcp.pop %v1127
    %v1129 = vmul.f32 1.0, %v1128
    %1131 = vrot.lane.b32.xlu0 %v1078, 32
    %v1132 = vpop.permute.xlu0 %1131
    %v1134 = vadd.f32 %v429, %v1132
    %v1135 = vxor.u32 %v1134, 2147483648
    %v1136 = vmul.f32 %v1135, 1.442695
    %v1137 = vpow.pop %v1136
    %v1138 = vadd.f32 %v1137, 1.0
    %v1139 = vrcp.pop %v1138
    %v1140 = vmul.f32 1.0, %v1139
    %v1141 = vmul.f32 %v1129, %v1118
    %1143 = vrot.lane.b32.xlu0 %v1141, 64
    %v1144 = vpop.permute.xlu0 %1143
    %v1146 = vadd.f32 %v429, %v1144
    %v1147 = vtanh.pop %v1146
    %v1148 = vsub.f32 1.0, %v1140
    %1150 = vrot.lane.b32.xlu0 %v1147, 96
    %v1151 = vpop.permute.xlu0 %1150
    %v1153 = vmul.f32 %v1148, %v1151
    %v1154 = vmul.f32 %v1140, %v994
    %v1155 = vadd.f32 %v1153, %v1154
    %v1156 = vadd.f32 %v995, %v1155
    %v1157 = vpack.c.bf16 %v1155, %v1155
    %1159 = vrot.lane.b32.xlu0 %v1157, 96
    %v1160 = vpop.permute.xlu0 %1159
    %v1162 = vsel %vm117, %v1160, 0
    %1164 = vmatprep.subr.bf16.mxu0 0
    %1165 = vmatpush1.bf16.msra.mxu0 %v477
    %1166 = vmatprep.subr.bf16.mxu0 0
    %1167 = vmatpush1.bf16.msra.mxu0 %v478
    %1168 = vmatprep.subr.bf16.mxu0 0
    %1169 = vmatpush1.bf16.msra.mxu0 0
    %1170 = vmatprep.subr.bf16.mxu0 0
    %1171 = vmatpush1.bf16.msra.mxu0 0
    %1172 = vmatprep.subr.bf16.mxu0 0
    %1173 = vmatpush1.bf16.msra.mxu0 0
    %1174 = vmatprep.subr.bf16.mxu0 0
    %1175 = vmatpush1.bf16.msra.mxu0 0
    %1176 = vmatprep.subr.bf16.mxu0 0
    %1177 = vmatpush1.bf16.msra.mxu0 0
    %1178 = vmatprep.subr.bf16.mxu0 0
    %1179 = vmatpush1.bf16.msra.mxu0 0
    %1180 = vmatprep.subr.bf16.mxu0 0
    %1181 = vmatpush1.bf16.msra.mxu0 0
    %1182 = vmatprep.subr.bf16.mxu0 0
    %1183 = vmatpush1.bf16.msra.mxu0 0
    %1184 = vmatprep.subr.bf16.mxu0 0
    %1185 = vmatpush1.bf16.msra.mxu0 0
    %1186 = vmatprep.subr.bf16.mxu0 0
    %1187 = vmatpush1.bf16.msra.mxu0 0
    %1188 = vmatprep.subr.bf16.mxu0 0
    %1189 = vmatpush1.bf16.msra.mxu0 0
    %1190 = vmatprep.subr.bf16.mxu0 0
    %1191 = vmatpush1.bf16.msra.mxu0 0
    %1192 = vmatprep.subr.bf16.mxu0 0
    %1193 = vmatpush1.bf16.msra.mxu0 0
    %1194 = vmatprep.subr.bf16.mxu0 0
    %1195 = vmatpush1.bf16.msra.mxu0 0
    %1196 = vmatprep.mubr.bf16.mxu0 0
    %1197 = vmatmul.mubr.bf16.gmra.mrb[0].mxu0 %v1162
    %v1198 = vpop.f32.mrb[0].mxu0
    %v1199 = vadd.f32 %v467, %v1198
    %v1200 = vpop.f32.mrb[0].mxu0
    %v1201 = vpop.f32.mrb[0].mxu0
    %v1202 = vpop.f32.mrb[0].mxu0
    %1203 = vdwg.mxu0
    %1204 = vmatprep.subr.bf16.mxu0 0
    %1205 = vmatpush1.bf16.msra.mxu0 %v538
    %1206 = vmatprep.subr.bf16.mxu0 0
    %1207 = vmatpush1.bf16.msra.mxu0 %v539
    %1208 = vmatprep.subr.bf16.mxu0 0
    %1209 = vmatpush1.bf16.msra.mxu0 0
    %1210 = vmatprep.subr.bf16.mxu0 0
    %1211 = vmatpush1.bf16.msra.mxu0 0
    %1212 = vmatprep.subr.bf16.mxu0 0
    %1213 = vmatpush1.bf16.msra.mxu0 0
    %1214 = vmatprep.subr.bf16.mxu0 0
    %1215 = vmatpush1.bf16.msra.mxu0 0
    %1216 = vmatprep.subr.bf16.mxu0 0
    %1217 = vmatpush1.bf16.msra.mxu0 0
    %1218 = vmatprep.subr.bf16.mxu0 0
    %1219 = vmatpush1.bf16.msra.mxu0 0
    %1220 = vmatprep.subr.bf16.mxu0 0
    %1221 = vmatpush1.bf16.msra.mxu0 0
    %1222 = vmatprep.subr.bf16.mxu0 0
    %1223 = vmatpush1.bf16.msra.mxu0 0
    %1224 = vmatprep.subr.bf16.mxu0 0
    %1225 = vmatpush1.bf16.msra.mxu0 0
    %1226 = vmatprep.subr.bf16.mxu0 0
    %1227 = vmatpush1.bf16.msra.mxu0 0
    %1228 = vmatprep.subr.bf16.mxu0 0
    %1229 = vmatpush1.bf16.msra.mxu0 0
    %1230 = vmatprep.subr.bf16.mxu0 0
    %1231 = vmatpush1.bf16.msra.mxu0 0
    %1232 = vmatprep.subr.bf16.mxu0 0
    %1233 = vmatpush1.bf16.msra.mxu0 0
    %1234 = vmatprep.subr.bf16.mxu0 0
    %1235 = vmatpush1.bf16.msra.mxu0 0
    %1236 = vmatprep.mubr.bf16.mxu0 0
    %1237 = vmatmul.mubr.bf16.gmra.mrb[0].mxu0 %v1162
    %v1238 = vpop.f32.mrb[0].mxu0
    %v1239 = vadd.f32 %v528, %v1238
    %v1240 = vpop.f32.mrb[0].mxu0
    %v1241 = vpop.f32.mrb[0].mxu0
    %v1242 = vpop.f32.mrb[0].mxu0
    %1243 = vdwg.mxu0
    %1244 = vmatprep.subr.bf16.mxu0 0
    %1245 = vmatpush1.bf16.msra.mxu0 %v596
    %1246 = vmatprep.subr.bf16.mxu0 0
    %1247 = vmatpush1.bf16.msra.mxu0 %v597
    %1248 = vmatprep.subr.bf16.mxu0 0
    %1249 = vmatpush1.bf16.msra.mxu0 0
    %1250 = vmatprep.subr.bf16.mxu0 0
    %1251 = vmatpush1.bf16.msra.mxu0 0
    %1252 = vmatprep.subr.bf16.mxu0 0
    %1253 = vmatpush1.bf16.msra.mxu0 0
    %1254 = vmatprep.subr.bf16.mxu0 0
    %1255 = vmatpush1.bf16.msra.mxu0 0
    %1256 = vmatprep.subr.bf16.mxu0 0
    %1257 = vmatpush1.bf16.msra.mxu0 0
    %1258 = vmatprep.subr.bf16.mxu0 0
    %1259 = vmatpush1.bf16.msra.mxu0 0
    %1260 = vmatprep.subr.bf16.mxu0 0
    %1261 = vmatpush1.bf16.msra.mxu0 0
    %1262 = vmatprep.subr.bf16.mxu0 0
    %1263 = vmatpush1.bf16.msra.mxu0 0
    %1264 = vmatprep.subr.bf16.mxu0 0
    %1265 = vmatpush1.bf16.msra.mxu0 0
    %1266 = vmatprep.subr.bf16.mxu0 0
    %1267 = vmatpush1.bf16.msra.mxu0 0
    %1268 = vmatprep.subr.bf16.mxu0 0
    %1269 = vmatpush1.bf16.msra.mxu0 0
    %1270 = vmatprep.subr.bf16.mxu0 0
    %1271 = vmatpush1.bf16.msra.mxu0 0
    %1272 = vmatprep.subr.bf16.mxu0 0
    %1273 = vmatpush1.bf16.msra.mxu0 0
    %1274 = vmatprep.subr.bf16.mxu0 0
    %1275 = vmatpush1.bf16.msra.mxu0 0
    %1276 = vmatprep.mubr.bf16.mxu0 0
    %1277 = vmatmul.mubr.bf16.gmra.mrb[0].mxu0 %v1162
    %v1278 = vpop.f32.mrb[0].mxu0
    %v1279 = vadd.f32 %v586, %v1278
    %v1280 = vpop.f32.mrb[0].mxu0
    %v1281 = vpop.f32.mrb[0].mxu0
    %v1282 = vpop.f32.mrb[0].mxu0
    %1283 = vdwg.mxu0
    %v1284 = vadd.f32 %v434, %v1199
    %v1285 = vxor.u32 %v1284, 2147483648
    %v1286 = vmul.f32 %v1285, 1.442695
    %v1287 = vpow.pop %v1286
    %v1288 = vadd.f32 %v1287, 1.0
    %v1289 = vrcp.pop %v1288
    %v1290 = vmul.f32 1.0, %v1289
    %1292 = vrot.lane.b32.xlu0 %v1239, 32
    %v1293 = vpop.permute.xlu0 %1292
    %v1295 = vadd.f32 %v434, %v1293
    %v1296 = vxor.u32 %v1295, 2147483648
    %v1297 = vmul.f32 %v1296, 1.442695
    %v1298 = vpow.pop %v1297
    %v1299 = vadd.f32 %v1298, 1.0
    %v1300 = vrcp.pop %v1299
    %v1301 = vmul.f32 1.0, %v1300
    %v1302 = vmul.f32 %v1290, %v1279
    %1304 = vrot.lane.b32.xlu0 %v1302, 64
    %v1305 = vpop.permute.xlu0 %1304
    %v1307 = vadd.f32 %v434, %v1305
    %v1308 = vtanh.pop %v1307
    %v1309 = vsub.f32 1.0, %v1301
    %1311 = vrot.lane.b32.xlu0 %v1308, 96
    %v1312 = vpop.permute.xlu0 %1311
    %v1314 = vmul.f32 %v1309, %v1312
    %v1315 = vmul.f32 %v1301, %v1155
    %v1316 = vadd.f32 %v1314, %v1315
    %v1317 = vadd.f32 %v1156, %v1316
    %v1318 = vpack.c.bf16 %v1316, %v1316
    %1320 = vrot.lane.b32.xlu0 %v1318, 96
    %v1321 = vpop.permute.xlu0 %1320
    %v1323 = vsel %vm117, %v1321, 0
    %1325 = vmatprep.subr.bf16.mxu0 0
    %1326 = vmatpush1.bf16.msra.mxu0 %v477
    %1327 = vmatprep.subr.bf16.mxu0 0
    %1328 = vmatpush1.bf16.msra.mxu0 %v478
    %1329 = vmatprep.subr.bf16.mxu0 0
    %1330 = vmatpush1.bf16.msra.mxu0 0
    %1331 = vmatprep.subr.bf16.mxu0 0
    %1332 = vmatpush1.bf16.msra.mxu0 0
    %1333 = vmatprep.subr.bf16.mxu0 0
    %1334 = vmatpush1.bf16.msra.mxu0 0
    %1335 = vmatprep.subr.bf16.mxu0 0
    %1336 = vmatpush1.bf16.msra.mxu0 0
    %1337 = vmatprep.subr.bf16.mxu0 0
    %1338 = vmatpush1.bf16.msra.mxu0 0
    %1339 = vmatprep.subr.bf16.mxu0 0
    %1340 = vmatpush1.bf16.msra.mxu0 0
    %1341 = vmatprep.subr.bf16.mxu0 0
    %1342 = vmatpush1.bf16.msra.mxu0 0
    %1343 = vmatprep.subr.bf16.mxu0 0
    %1344 = vmatpush1.bf16.msra.mxu0 0
    %1345 = vmatprep.subr.bf16.mxu0 0
    %1346 = vmatpush1.bf16.msra.mxu0 0
    %1347 = vmatprep.subr.bf16.mxu0 0
    %1348 = vmatpush1.bf16.msra.mxu0 0
    %1349 = vmatprep.subr.bf16.mxu0 0
    %1350 = vmatpush1.bf16.msra.mxu0 0
    %1351 = vmatprep.subr.bf16.mxu0 0
    %1352 = vmatpush1.bf16.msra.mxu0 0
    %1353 = vmatprep.subr.bf16.mxu0 0
    %1354 = vmatpush1.bf16.msra.mxu0 0
    %1355 = vmatprep.subr.bf16.mxu0 0
    %1356 = vmatpush1.bf16.msra.mxu0 0
    %1357 = vmatprep.mubr.bf16.mxu0 0
    %1358 = vmatmul.mubr.bf16.gmra.mrb[0].mxu0 %v1323
    %v1359 = vpop.f32.mrb[0].mxu0
    %v1360 = vadd.f32 %v467, %v1359
    %v1361 = vpop.f32.mrb[0].mxu0
    %v1362 = vpop.f32.mrb[0].mxu0
    %v1363 = vpop.f32.mrb[0].mxu0
    %1364 = vdwg.mxu0
    %1365 = vmatprep.subr.bf16.mxu0 0
    %1366 = vmatpush1.bf16.msra.mxu0 %v538
    %1367 = vmatprep.subr.bf16.mxu0 0
    %1368 = vmatpush1.bf16.msra.mxu0 %v539
    %1369 = vmatprep.subr.bf16.mxu0 0
    %1370 = vmatpush1.bf16.msra.mxu0 0
    %1371 = vmatprep.subr.bf16.mxu0 0
    %1372 = vmatpush1.bf16.msra.mxu0 0
    %1373 = vmatprep.subr.bf16.mxu0 0
    %1374 = vmatpush1.bf16.msra.mxu0 0
    %1375 = vmatprep.subr.bf16.mxu0 0
    %1376 = vmatpush1.bf16.msra.mxu0 0
    %1377 = vmatprep.subr.bf16.mxu0 0
    %1378 = vmatpush1.bf16.msra.mxu0 0
    %1379 = vmatprep.subr.bf16.mxu0 0
    %1380 = vmatpush1.bf16.msra.mxu0 0
    %1381 = vmatprep.subr.bf16.mxu0 0
    %1382 = vmatpush1.bf16.msra.mxu0 0
    %1383 = vmatprep.subr.bf16.mxu0 0
    %1384 = vmatpush1.bf16.msra.mxu0 0
    %1385 = vmatprep.subr.bf16.mxu0 0
    %1386 = vmatpush1.bf16.msra.mxu0 0
    %1387 = vmatprep.subr.bf16.mxu0 0
    %1388 = vmatpush1.bf16.msra.mxu0 0
    %1389 = vmatprep.subr.bf16.mxu0 0
    %1390 = vmatpush1.bf16.msra.mxu0 0
    %1391 = vmatprep.subr.bf16.mxu0 0
    %1392 = vmatpush1.bf16.msra.mxu0 0
    %1393 = vmatprep.subr.bf16.mxu0 0
    %1394 = vmatpush1.bf16.msra.mxu0 0
    %1395 = vmatprep.subr.bf16.mxu0 0
    %1396 = vmatpush1.bf16.msra.mxu0 0
    %1397 = vmatprep.mubr.bf16.mxu0 0
    %1398 = vmatmul.mubr.bf16.gmra.mrb[0].mxu0 %v1323
    %v1399 = vpop.f32.mrb[0].mxu0
    %v1400 = vadd.f32 %v528, %v1399
    %v1401 = vpop.f32.mrb[0].mxu0
    %v1402 = vpop.f32.mrb[0].mxu0
    %v1403 = vpop.f32.mrb[0].mxu0
    %1404 = vdwg.mxu0
    %1405 = vmatprep.subr.bf16.mxu0 0
    %1406 = vmatpush1.bf16.msra.mxu0 %v596
    %1407 = vmatprep.subr.bf16.mxu0 0
    %1408 = vmatpush1.bf16.msra.mxu0 %v597
    %1409 = vmatprep.subr.bf16.mxu0 0
    %1410 = vmatpush1.bf16.msra.mxu0 0
    %1411 = vmatprep.subr.bf16.mxu0 0
    %1412 = vmatpush1.bf16.msra.mxu0 0
    %1413 = vmatprep.subr.bf16.mxu0 0
    %1414 = vmatpush1.bf16.msra.mxu0 0
    %1415 = vmatprep.subr.bf16.mxu0 0
    %1416 = vmatpush1.bf16.msra.mxu0 0
    %1417 = vmatprep.subr.bf16.mxu0 0
    %1418 = vmatpush1.bf16.msra.mxu0 0
    %1419 = vmatprep.subr.bf16.mxu0 0
    %1420 = vmatpush1.bf16.msra.mxu0 0
    %1421 = vmatprep.subr.bf16.mxu0 0
    %1422 = vmatpush1.bf16.msra.mxu0 0
    %1423 = vmatprep.subr.bf16.mxu0 0
    %1424 = vmatpush1.bf16.msra.mxu0 0
    %1425 = vmatprep.subr.bf16.mxu0 0
    %1426 = vmatpush1.bf16.msra.mxu0 0
    %1427 = vmatprep.subr.bf16.mxu0 0
    %1428 = vmatpush1.bf16.msra.mxu0 0
    %1429 = vmatprep.subr.bf16.mxu0 0
    %1430 = vmatpush1.bf16.msra.mxu0 0
    %1431 = vmatprep.subr.bf16.mxu0 0
    %1432 = vmatpush1.bf16.msra.mxu0 0
    %1433 = vmatprep.subr.bf16.mxu0 0
    %1434 = vmatpush1.bf16.msra.mxu0 0
    %1435 = vmatprep.subr.bf16.mxu0 0
    %1436 = vmatpush1.bf16.msra.mxu0 0
    %1437 = vmatprep.mubr.bf16.mxu0 0
    %1438 = vmatmul.mubr.bf16.gmra.mrb[0].mxu0 %v1323
    %v1439 = vpop.f32.mrb[0].mxu0
    %v1440 = vadd.f32 %v586, %v1439
    %v1441 = vpop.f32.mrb[0].mxu0
    %v1442 = vpop.f32.mrb[0].mxu0
    %v1443 = vpop.f32.mrb[0].mxu0
    %1444 = vdwg.mxu0
    %v1445 = vadd.f32 %v437, %v1360
    %v1446 = vxor.u32 %v1445, 2147483648
    %v1447 = vmul.f32 %v1446, 1.442695
    %v1448 = vpow.pop %v1447
    %v1449 = vadd.f32 %v1448, 1.0
    %v1450 = vrcp.pop %v1449
    %v1451 = vmul.f32 1.0, %v1450
    %1453 = vrot.lane.b32.xlu0 %v1400, 32
    %v1454 = vpop.permute.xlu0 %1453
    %v1456 = vadd.f32 %v437, %v1454
    %v1457 = vxor.u32 %v1456, 2147483648
    %v1458 = vmul.f32 %v1457, 1.442695
    %v1459 = vpow.pop %v1458
    %v1460 = vadd.f32 %v1459, 1.0
    %v1461 = vrcp.pop %v1460
    %v1462 = vmul.f32 1.0, %v1461
    %v1463 = vmul.f32 %v1451, %v1440
    %1465 = vrot.lane.b32.xlu0 %v1463, 64
    %v1466 = vpop.permute.xlu0 %1465
    %v1468 = vadd.f32 %v437, %v1466
    %v1469 = vtanh.pop %v1468
    %v1470 = vsub.f32 1.0, %v1462
    %1472 = vrot.lane.b32.xlu0 %v1469, 96
    %v1473 = vpop.permute.xlu0 %1472
    %v1475 = vmul.f32 %v1470, %v1473
    %v1476 = vmul.f32 %v1462, %v1316
    %v1477 = vadd.f32 %v1475, %v1476
    %v1478 = vadd.f32 %v1317, %v1477
    %v1479 = vpack.c.bf16 %v1477, %v1477
    %1481 = vrot.lane.b32.xlu0 %v1479, 96
    %v1482 = vpop.permute.xlu0 %1481
    %v1484 = vsel %vm117, %v1482, 0
    %1486 = vmatprep.subr.bf16.mxu0 0
    %1487 = vmatpush1.bf16.msra.mxu0 %v477
    %1488 = vmatprep.subr.bf16.mxu0 0
    %1489 = vmatpush1.bf16.msra.mxu0 %v478
    %1490 = vmatprep.subr.bf16.mxu0 0
    %1491 = vmatpush1.bf16.msra.mxu0 0
    %1492 = vmatprep.subr.bf16.mxu0 0
    %1493 = vmatpush1.bf16.msra.mxu0 0
    %1494 = vmatprep.subr.bf16.mxu0 0
    %1495 = vmatpush1.bf16.msra.mxu0 0
    %1496 = vmatprep.subr.bf16.mxu0 0
    %1497 = vmatpush1.bf16.msra.mxu0 0
    %1498 = vmatprep.subr.bf16.mxu0 0
    %1499 = vmatpush1.bf16.msra.mxu0 0
    %1500 = vmatprep.subr.bf16.mxu0 0
    %1501 = vmatpush1.bf16.msra.mxu0 0
    %1502 = vmatprep.subr.bf16.mxu0 0
    %1503 = vmatpush1.bf16.msra.mxu0 0
    %1504 = vmatprep.subr.bf16.mxu0 0
    %1505 = vmatpush1.bf16.msra.mxu0 0
    %1506 = vmatprep.subr.bf16.mxu0 0
    %1507 = vmatpush1.bf16.msra.mxu0 0
    %1508 = vmatprep.subr.bf16.mxu0 0
    %1509 = vmatpush1.bf16.msra.mxu0 0
    %1510 = vmatprep.subr.bf16.mxu0 0
    %1511 = vmatpush1.bf16.msra.mxu0 0
    %1512 = vmatprep.subr.bf16.mxu0 0
    %1513 = vmatpush1.bf16.msra.mxu0 0
    %1514 = vmatprep.subr.bf16.mxu0 0
    %1515 = vmatpush1.bf16.msra.mxu0 0
    %1516 = vmatprep.subr.bf16.mxu0 0
    %1517 = vmatpush1.bf16.msra.mxu0 0
    %1518 = vmatprep.mubr.bf16.mxu0 0
    %1519 = vmatmul.mubr.bf16.gmra.mrb[0].mxu0 %v1484
    %v1520 = vpop.f32.mrb[0].mxu0
    %v1521 = vadd.f32 %v467, %v1520
    %v1522 = vpop.f32.mrb[0].mxu0
    %v1523 = vpop.f32.mrb[0].mxu0
    %v1524 = vpop.f32.mrb[0].mxu0
    %1525 = vdwg.mxu0
    %1526 = vmatprep.subr.bf16.mxu0 0
    %1527 = vmatpush1.bf16.msra.mxu0 %v538
    %1528 = vmatprep.subr.bf16.mxu0 0
    %1529 = vmatpush1.bf16.msra.mxu0 %v539
    %1530 = vmatprep.subr.bf16.mxu0 0
    %1531 = vmatpush1.bf16.msra.mxu0 0
    %1532 = vmatprep.subr.bf16.mxu0 0
    %1533 = vmatpush1.bf16.msra.mxu0 0
    %1534 = vmatprep.subr.bf16.mxu0 0
    %1535 = vmatpush1.bf16.msra.mxu0 0
    %1536 = vmatprep.subr.bf16.mxu0 0
    %1537 = vmatpush1.bf16.msra.mxu0 0
    %1538 = vmatprep.subr.bf16.mxu0 0
    %1539 = vmatpush1.bf16.msra.mxu0 0
    %1540 = vmatprep.subr.bf16.mxu0 0
    %1541 = vmatpush1.bf16.msra.mxu0 0
    %1542 = vmatprep.subr.bf16.mxu0 0
    %1543 = vmatpush1.bf16.msra.mxu0 0
    %1544 = vmatprep.subr.bf16.mxu0 0
    %1545 = vmatpush1.bf16.msra.mxu0 0
    %1546 = vmatprep.subr.bf16.mxu0 0
    %1547 = vmatpush1.bf16.msra.mxu0 0
    %1548 = vmatprep.subr.bf16.mxu0 0
    %1549 = vmatpush1.bf16.msra.mxu0 0
    %1550 = vmatprep.subr.bf16.mxu0 0
    %1551 = vmatpush1.bf16.msra.mxu0 0
    %1552 = vmatprep.subr.bf16.mxu0 0
    %1553 = vmatpush1.bf16.msra.mxu0 0
    %1554 = vmatprep.subr.bf16.mxu0 0
    %1555 = vmatpush1.bf16.msra.mxu0 0
    %1556 = vmatprep.subr.bf16.mxu0 0
    %1557 = vmatpush1.bf16.msra.mxu0 0
    %1558 = vmatprep.mubr.bf16.mxu0 0
    %1559 = vmatmul.mubr.bf16.gmra.mrb[0].mxu0 %v1484
    %v1560 = vpop.f32.mrb[0].mxu0
    %v1561 = vadd.f32 %v528, %v1560
    %v1562 = vpop.f32.mrb[0].mxu0
    %v1563 = vpop.f32.mrb[0].mxu0
    %v1564 = vpop.f32.mrb[0].mxu0
    %1565 = vdwg.mxu0
    %1566 = vmatprep.subr.bf16.mxu0 0
    %1567 = vmatpush1.bf16.msra.mxu0 %v596
    %1568 = vmatprep.subr.bf16.mxu0 0
    %1569 = vmatpush1.bf16.msra.mxu0 %v597
    %1570 = vmatprep.subr.bf16.mxu0 0
    %1571 = vmatpush1.bf16.msra.mxu0 0
    %1572 = vmatprep.subr.bf16.mxu0 0
    %1573 = vmatpush1.bf16.msra.mxu0 0
    %1574 = vmatprep.subr.bf16.mxu0 0
    %1575 = vmatpush1.bf16.msra.mxu0 0
    %1576 = vmatprep.subr.bf16.mxu0 0
    %1577 = vmatpush1.bf16.msra.mxu0 0
    %1578 = vmatprep.subr.bf16.mxu0 0
    %1579 = vmatpush1.bf16.msra.mxu0 0
    %1580 = vmatprep.subr.bf16.mxu0 0
    %1581 = vmatpush1.bf16.msra.mxu0 0
    %1582 = vmatprep.subr.bf16.mxu0 0
    %1583 = vmatpush1.bf16.msra.mxu0 0
    %1584 = vmatprep.subr.bf16.mxu0 0
    %1585 = vmatpush1.bf16.msra.mxu0 0
    %1586 = vmatprep.subr.bf16.mxu0 0
    %1587 = vmatpush1.bf16.msra.mxu0 0
    %1588 = vmatprep.subr.bf16.mxu0 0
    %1589 = vmatpush1.bf16.msra.mxu0 0
    %1590 = vmatprep.subr.bf16.mxu0 0
    %1591 = vmatpush1.bf16.msra.mxu0 0
    %1592 = vmatprep.subr.bf16.mxu0 0
    %1593 = vmatpush1.bf16.msra.mxu0 0
    %1594 = vmatprep.subr.bf16.mxu0 0
    %1595 = vmatpush1.bf16.msra.mxu0 0
    %1596 = vmatprep.subr.bf16.mxu0 0
    %1597 = vmatpush1.bf16.msra.mxu0 0
    %1598 = vmatprep.mubr.bf16.mxu0 0
    %1599 = vmatmul.mubr.bf16.gmra.mrb[0].mxu0 %v1484
    %v1600 = vpop.f32.mrb[0].mxu0
    %v1601 = vadd.f32 %v586, %v1600
    %v1602 = vpop.f32.mrb[0].mxu0
    %v1603 = vpop.f32.mrb[0].mxu0
    %v1604 = vpop.f32.mrb[0].mxu0
    %1605 = vdwg.mxu0
    %v1606 = vadd.f32 %v442, %v1521
    %v1607 = vxor.u32 %v1606, 2147483648
    %v1608 = vmul.f32 %v1607, 1.442695
    %v1609 = vpow.pop %v1608
    %v1610 = vadd.f32 %v1609, 1.0
    %v1611 = vrcp.pop %v1610
    %v1612 = vmul.f32 1.0, %v1611
    %1614 = vrot.lane.b32.xlu0 %v1561, 32
    %v1615 = vpop.permute.xlu0 %1614
    %v1617 = vadd.f32 %v442, %v1615
    %v1618 = vxor.u32 %v1617, 2147483648
    %v1619 = vmul.f32 %v1618, 1.442695
    %v1620 = vpow.pop %v1619
    %v1621 = vadd.f32 %v1620, 1.0
    %v1622 = vrcp.pop %v1621
    %v1623 = vmul.f32 1.0, %v1622
    %v1624 = vmul.f32 %v1612, %v1601
    %1626 = vrot.lane.b32.xlu0 %v1624, 64
    %v1627 = vpop.permute.xlu0 %1626
    %v1629 = vadd.f32 %v442, %v1627
    %v1630 = vtanh.pop %v1629
    %v1631 = vsub.f32 1.0, %v1623
    %1633 = vrot.lane.b32.xlu0 %v1630, 96
    %v1634 = vpop.permute.xlu0 %1633
    %v1636 = vmul.f32 %v1631, %v1634
    %v1637 = vmul.f32 %v1623, %v1477
    %v1638 = vadd.f32 %v1636, %v1637
    %v1639 = vadd.f32 %v1478, %v1638
    %v1640 = vpack.c.bf16 %v1638, %v1638
    %1642 = vrot.lane.b32.xlu0 %v1640, 96
    %v1643 = vpop.permute.xlu0 %1642
    %v1645 = vsel %vm117, %v1643, 0
    %1647 = vmatprep.subr.bf16.mxu0 0
    %1648 = vmatpush1.bf16.msra.mxu0 %v477
    %1649 = vmatprep.subr.bf16.mxu0 0
    %1650 = vmatpush1.bf16.msra.mxu0 %v478
    %1651 = vmatprep.subr.bf16.mxu0 0
    %1652 = vmatpush1.bf16.msra.mxu0 0
    %1653 = vmatprep.subr.bf16.mxu0 0
    %1654 = vmatpush1.bf16.msra.mxu0 0
    %1655 = vmatprep.subr.bf16.mxu0 0
    %1656 = vmatpush1.bf16.msra.mxu0 0
    %1657 = vmatprep.subr.bf16.mxu0 0
    %1658 = vmatpush1.bf16.msra.mxu0 0
    %1659 = vmatprep.subr.bf16.mxu0 0
    %1660 = vmatpush1.bf16.msra.mxu0 0
    %1661 = vmatprep.subr.bf16.mxu0 0
    %1662 = vmatpush1.bf16.msra.mxu0 0
    %1663 = vmatprep.subr.bf16.mxu0 0
    %1664 = vmatpush1.bf16.msra.mxu0 0
    %1665 = vmatprep.subr.bf16.mxu0 0
    %1666 = vmatpush1.bf16.msra.mxu0 0
    %1667 = vmatprep.subr.bf16.mxu0 0
    %1668 = vmatpush1.bf16.msra.mxu0 0
    %1669 = vmatprep.subr.bf16.mxu0 0
    %1670 = vmatpush1.bf16.msra.mxu0 0
    %1671 = vmatprep.subr.bf16.mxu0 0
    %1672 = vmatpush1.bf16.msra.mxu0 0
    %1673 = vmatprep.subr.bf16.mxu0 0
    %1674 = vmatpush1.bf16.msra.mxu0 0
    %1675 = vmatprep.subr.bf16.mxu0 0
    %1676 = vmatpush1.bf16.msra.mxu0 0
    %1677 = vmatprep.subr.bf16.mxu0 0
    %1678 = vmatpush1.bf16.msra.mxu0 0
    %1679 = vmatprep.mubr.bf16.mxu0 0
    %1680 = vmatmul.mubr.bf16.gmra.mrb[0].mxu0 %v1645
    %v1681 = vpop.f32.mrb[0].mxu0
    %v1682 = vadd.f32 %v467, %v1681
    %v1683 = vpop.f32.mrb[0].mxu0
    %v1684 = vpop.f32.mrb[0].mxu0
    %v1685 = vpop.f32.mrb[0].mxu0
    %1686 = vdwg.mxu0
    %1687 = vmatprep.subr.bf16.mxu0 0
    %1688 = vmatpush1.bf16.msra.mxu0 %v538
    %1689 = vmatprep.subr.bf16.mxu0 0
    %1690 = vmatpush1.bf16.msra.mxu0 %v539
    %1691 = vmatprep.subr.bf16.mxu0 0
    %1692 = vmatpush1.bf16.msra.mxu0 0
    %1693 = vmatprep.subr.bf16.mxu0 0
    %1694 = vmatpush1.bf16.msra.mxu0 0
    %1695 = vmatprep.subr.bf16.mxu0 0
    %1696 = vmatpush1.bf16.msra.mxu0 0
    %1697 = vmatprep.subr.bf16.mxu0 0
    %1698 = vmatpush1.bf16.msra.mxu0 0
    %1699 = vmatprep.subr.bf16.mxu0 0
    %1700 = vmatpush1.bf16.msra.mxu0 0
    %1701 = vmatprep.subr.bf16.mxu0 0
    %1702 = vmatpush1.bf16.msra.mxu0 0
    %1703 = vmatprep.subr.bf16.mxu0 0
    %1704 = vmatpush1.bf16.msra.mxu0 0
    %1705 = vmatprep.subr.bf16.mxu0 0
    %1706 = vmatpush1.bf16.msra.mxu0 0
    %1707 = vmatprep.subr.bf16.mxu0 0
    %1708 = vmatpush1.bf16.msra.mxu0 0
    %1709 = vmatprep.subr.bf16.mxu0 0
    %1710 = vmatpush1.bf16.msra.mxu0 0
    %1711 = vmatprep.subr.bf16.mxu0 0
    %1712 = vmatpush1.bf16.msra.mxu0 0
    %1713 = vmatprep.subr.bf16.mxu0 0
    %1714 = vmatpush1.bf16.msra.mxu0 0
    %1715 = vmatprep.subr.bf16.mxu0 0
    %1716 = vmatpush1.bf16.msra.mxu0 0
    %1717 = vmatprep.subr.bf16.mxu0 0
    %1718 = vmatpush1.bf16.msra.mxu0 0
    %1719 = vmatprep.mubr.bf16.mxu0 0
    %1720 = vmatmul.mubr.bf16.gmra.mrb[0].mxu0 %v1645
    %v1721 = vpop.f32.mrb[0].mxu0
    %v1722 = vadd.f32 %v528, %v1721
    %v1723 = vpop.f32.mrb[0].mxu0
    %v1724 = vpop.f32.mrb[0].mxu0
    %v1725 = vpop.f32.mrb[0].mxu0
    %1726 = vdwg.mxu0
    %1727 = vmatprep.subr.bf16.mxu0 0
    %1728 = vmatpush1.bf16.msra.mxu0 %v596
    %1729 = vmatprep.subr.bf16.mxu0 0
    %1730 = vmatpush1.bf16.msra.mxu0 %v597
    %1731 = vmatprep.subr.bf16.mxu0 0
    %1732 = vmatpush1.bf16.msra.mxu0 0
    %1733 = vmatprep.subr.bf16.mxu0 0
    %1734 = vmatpush1.bf16.msra.mxu0 0
    %1735 = vmatprep.subr.bf16.mxu0 0
    %1736 = vmatpush1.bf16.msra.mxu0 0
    %1737 = vmatprep.subr.bf16.mxu0 0
    %1738 = vmatpush1.bf16.msra.mxu0 0
    %1739 = vmatprep.subr.bf16.mxu0 0
    %1740 = vmatpush1.bf16.msra.mxu0 0
    %1741 = vmatprep.subr.bf16.mxu0 0
    %1742 = vmatpush1.bf16.msra.mxu0 0
    %1743 = vmatprep.subr.bf16.mxu0 0
    %1744 = vmatpush1.bf16.msra.mxu0 0
    %1745 = vmatprep.subr.bf16.mxu0 0
    %1746 = vmatpush1.bf16.msra.mxu0 0
    %1747 = vmatprep.subr.bf16.mxu0 0
    %1748 = vmatpush1.bf16.msra.mxu0 0
    %1749 = vmatprep.subr.bf16.mxu0 0
    %1750 = vmatpush1.bf16.msra.mxu0 0
    %1751 = vmatprep.subr.bf16.mxu0 0
    %1752 = vmatpush1.bf16.msra.mxu0 0
    %1753 = vmatprep.subr.bf16.mxu0 0
    %1754 = vmatpush1.bf16.msra.mxu0 0
    %1755 = vmatprep.subr.bf16.mxu0 0
    %1756 = vmatpush1.bf16.msra.mxu0 0
    %1757 = vmatprep.subr.bf16.mxu0 0
    %1758 = vmatpush1.bf16.msra.mxu0 0
    %1759 = vmatprep.mubr.bf16.mxu0 0
    %1760 = vmatmul.mubr.bf16.gmra.mrb[0].mxu0 %v1645
    %v1761 = vpop.f32.mrb[0].mxu0
    %v1762 = vadd.f32 %v586, %v1761
    %v1763 = vpop.f32.mrb[0].mxu0
    %v1764 = vpop.f32.mrb[0].mxu0
    %v1765 = vpop.f32.mrb[0].mxu0
    %1766 = vdwg.mxu0
    %v1767 = vadd.f32 %v445, %v1682
    %v1768 = vxor.u32 %v1767, 2147483648
    %v1769 = vmul.f32 %v1768, 1.442695
    %v1770 = vpow.pop %v1769
    %v1771 = vadd.f32 %v1770, 1.0
    %v1772 = vrcp.pop %v1771
    %v1773 = vmul.f32 1.0, %v1772
    %1775 = vrot.lane.b32.xlu0 %v1722, 32
    %v1776 = vpop.permute.xlu0 %1775
    %v1778 = vadd.f32 %v445, %v1776
    %v1779 = vxor.u32 %v1778, 2147483648
    %v1780 = vmul.f32 %v1779, 1.442695
    %v1781 = vpow.pop %v1780
    %v1782 = vadd.f32 %v1781, 1.0
    %v1783 = vrcp.pop %v1782
    %v1784 = vmul.f32 1.0, %v1783
    %v1785 = vmul.f32 %v1773, %v1762
    %1787 = vrot.lane.b32.xlu0 %v1785, 64
    %v1788 = vpop.permute.xlu0 %1787
    %v1790 = vadd.f32 %v445, %v1788
    %v1791 = vtanh.pop %v1790
    %v1792 = vsub.f32 1.0, %v1784
    %1794 = vrot.lane.b32.xlu0 %v1791, 96
    %v1795 = vpop.permute.xlu0 %1794
    %v1797 = vmul.f32 %v1792, %v1795
    %v1798 = vmul.f32 %v1784, %v1638
    %v1799 = vadd.f32 %v1797, %v1798
    %v1800 = vadd.f32 %v1639, %v1799
    %v1801 = vpack.c.bf16 %v1800, %v1800
    %v1802 = vld [vmem:[%s12] sm:$0xf]
    %v1803 = vld [vmem:[%s12 + $0x4] sm:$0xf]
    %v1804 = vld [vmem:[%s12 + $0x8] sm:$0xf]
    %v1805 = vld [vmem:[%s12 + $0xc] sm:$0xf]
    %v1806 = vld [vmem:[%s13] sm:$0x1]
    %v1808 = vlaneseq
    %v1809 = vshrl.u32 %v1808, 7
    %v1810 = vsub.s32 0, %v1809
    %v1811 = vrot.slane %v1806, %v1810
    %1814 = vrot.lane.b32.xlu0 %v1801, 96
    %v1815 = vpop.permute.xlu0 %1814
    %v1820 = vunpack.c.l.b16 %v1802
    %v1821 = vunpack.c.l.b16 %v1803
    %v1822 = vunpack.c.l.b16 %v1804
    %v1823 = vunpack.c.l.b16 %v1805
    %v1824 = vpack.c.b16 %v1821, %v1820
    %v1825 = vpack.c.b16 %v1823, %v1822
    %v1829 = vsel %vm117, %v1815, 0
    %1831 = vmatprep.subr.bf16.mxu0 0
    %1832 = vmatpush1.bf16.msra.mxu0 %v1824
    %1833 = vmatprep.subr.bf16.mxu0 0
    %1834 = vmatpush1.bf16.msra.mxu0 %v1825
    %1835 = vmatprep.subr.bf16.mxu0 0
    %1836 = vmatpush1.bf16.msra.mxu0 0
    %1837 = vmatprep.subr.bf16.mxu0 0
    %1838 = vmatpush1.bf16.msra.mxu0 0
    %1839 = vmatprep.subr.bf16.mxu0 0
    %1840 = vmatpush1.bf16.msra.mxu0 0
    %1841 = vmatprep.subr.bf16.mxu0 0
    %1842 = vmatpush1.bf16.msra.mxu0 0
    %1843 = vmatprep.subr.bf16.mxu0 0
    %1844 = vmatpush1.bf16.msra.mxu0 0
    %1845 = vmatprep.subr.bf16.mxu0 0
    %1846 = vmatpush1.bf16.msra.mxu0 0
    %1847 = vmatprep.subr.bf16.mxu0 0
    %1848 = vmatpush1.bf16.msra.mxu0 0
    %1849 = vmatprep.subr.bf16.mxu0 0
    %1850 = vmatpush1.bf16.msra.mxu0 0
    %1851 = vmatprep.subr.bf16.mxu0 0
    %1852 = vmatpush1.bf16.msra.mxu0 0
    %1853 = vmatprep.subr.bf16.mxu0 0
    %1854 = vmatpush1.bf16.msra.mxu0 0
    %1855 = vmatprep.subr.bf16.mxu0 0
    %1856 = vmatpush1.bf16.msra.mxu0 0
    %1857 = vmatprep.subr.bf16.mxu0 0
    %1858 = vmatpush1.bf16.msra.mxu0 0
    %1859 = vmatprep.subr.bf16.mxu0 0
    %1860 = vmatpush1.bf16.msra.mxu0 0
    %1861 = vmatprep.subr.bf16.mxu0 0
    %1862 = vmatpush1.bf16.msra.mxu0 0
    %1863 = vmatprep.mubr.bf16.mxu0 0
    %1864 = vmatmul.mubr.bf16.gmra.mrb[0].mxu0 %v1829
    %v1865 = vpop.f32.mrb[0].mxu0
    %v1866 = vadd.f32 %v1811, %v1865
    %v1867 = vpop.f32.mrb[0].mxu0
    %v1868 = vpop.f32.mrb[0].mxu0
    %v1869 = vpop.f32.mrb[0].mxu0
    %1870 = vdwg.mxu0
    %v1871 = vmax.f32 %v1866, 0.0
    %v1872 = vpack.c.bf16 %v1871, %v1871
    %v1873 = vld [vmem:[%s14] sm:$0xf]
    %v1874 = vld [vmem:[%s14 + $0x4] sm:$0xf]
    %v1875 = vld [vmem:[%s14 + $0x8] sm:$0xf]
    %v1876 = vld [vmem:[%s14 + $0xc] sm:$0xf]
    %v1877 = vld [vmem:[%s14 + $0x10] sm:$0xf]
    %v1878 = vld [vmem:[%s14 + $0x14] sm:$0xf]
    %v1879 = vld [vmem:[%s14 + $0x18] sm:$0xf]
    %v1880 = vld [vmem:[%s14 + $0x1c] sm:$0xf]
    %v1881 = vld [vmem:[%s14 + $0x20] sm:$0xf]
    %v1882 = vld [vmem:[%s14 + $0x24] sm:$0xf]
    %v1883 = vld [vmem:[%s14 + $0x28] sm:$0xf]
    %v1884 = vld [vmem:[%s14 + $0x2c] sm:$0xf]
    %v1885 = vld [vmem:[%s14 + $0x30] sm:$0xf]
    %v1886 = vld [vmem:[%s14 + $0x34] sm:$0xf]
    %v1887 = vld [vmem:[%s14 + $0x38] sm:$0xf]
    %v1888 = vld [vmem:[%s14 + $0x3c] sm:$0xf]
    %v1889 = vld [vmem:[%s15] sm:$0x1]
    %v1891 = vlaneseq
    %v1892 = vshrl.u32 %v1891, 7
    %v1893 = vsub.s32 0, %v1892
    %v1894 = vrot.slane %v1889, %v1893
    %v1912 = vunpack.c.l.b16 %v1873
    %v1913 = vunpack.c.l.b16 %v1874
    %v1914 = vunpack.c.l.b16 %v1875
    %v1915 = vunpack.c.l.b16 %v1876
    %v1916 = vunpack.c.l.b16 %v1877
    %v1917 = vunpack.c.l.b16 %v1878
    %v1918 = vunpack.c.l.b16 %v1879
    %v1919 = vunpack.c.l.b16 %v1880
    %v1920 = vunpack.c.l.b16 %v1881
    %v1921 = vunpack.c.l.b16 %v1882
    %v1922 = vunpack.c.l.b16 %v1883
    %v1923 = vunpack.c.l.b16 %v1884
    %v1924 = vunpack.c.l.b16 %v1885
    %v1925 = vunpack.c.l.b16 %v1886
    %v1926 = vunpack.c.l.b16 %v1887
    %v1927 = vunpack.c.l.b16 %v1888
    %v1928 = vpack.c.b16 %v1913, %v1912
    %v1929 = vpack.c.b16 %v1915, %v1914
    %v1930 = vpack.c.b16 %v1917, %v1916
    %v1931 = vpack.c.b16 %v1919, %v1918
    %v1932 = vpack.c.b16 %v1921, %v1920
    %v1933 = vpack.c.b16 %v1923, %v1922
    %v1934 = vpack.c.b16 %v1925, %v1924
    %v1935 = vpack.c.b16 %v1927, %v1926
    %1944 = vmatprep.subr.bf16.mxu0 0
    %1945 = vmatpush1.bf16.msra.mxu0 %v1928
    %1946 = vmatprep.subr.bf16.mxu0 0
    %1947 = vmatpush1.bf16.msra.mxu0 %v1929
    %1948 = vmatprep.subr.bf16.mxu0 0
    %1949 = vmatpush1.bf16.msra.mxu0 %v1930
    %1950 = vmatprep.subr.bf16.mxu0 0
    %1951 = vmatpush1.bf16.msra.mxu0 %v1931
    %1952 = vmatprep.subr.bf16.mxu0 0
    %1953 = vmatpush1.bf16.msra.mxu0 %v1932
    %1954 = vmatprep.subr.bf16.mxu0 0
    %1955 = vmatpush1.bf16.msra.mxu0 %v1933
    %1956 = vmatprep.subr.bf16.mxu0 0
    %1957 = vmatpush1.bf16.msra.mxu0 %v1934
    %1958 = vmatprep.subr.bf16.mxu0 0
    %1959 = vmatpush1.bf16.msra.mxu0 %v1935
    %1960 = vmatprep.subr.bf16.mxu0 0
    %1961 = vmatpush1.bf16.msra.mxu0 0
    %1962 = vmatprep.subr.bf16.mxu0 0
    %1963 = vmatpush1.bf16.msra.mxu0 0
    %1964 = vmatprep.subr.bf16.mxu0 0
    %1965 = vmatpush1.bf16.msra.mxu0 0
    %1966 = vmatprep.subr.bf16.mxu0 0
    %1967 = vmatpush1.bf16.msra.mxu0 0
    %1968 = vmatprep.subr.bf16.mxu0 0
    %1969 = vmatpush1.bf16.msra.mxu0 0
    %1970 = vmatprep.subr.bf16.mxu0 0
    %1971 = vmatpush1.bf16.msra.mxu0 0
    %1972 = vmatprep.subr.bf16.mxu0 0
    %1973 = vmatpush1.bf16.msra.mxu0 0
    %1974 = vmatprep.subr.bf16.mxu0 0
    %1975 = vmatpush1.bf16.msra.mxu0 0
    %1976 = vmatprep.mubr.bf16.mxu0 0
    %1977 = vmatmul.mubr.bf16.gmra.mrb[0].mxu0 %v1872
    %v1978 = vpop.f32.mrb[0].mxu0
    %v1979 = vadd.f32 %v1894, %v1978
    %v1980 = vpop.f32.mrb[0].mxu0
    %v1981 = vpop.f32.mrb[0].mxu0
    %v1982 = vpop.f32.mrb[0].mxu0
    %1983 = vdwg.mxu0
    %1984 = vst [vmem:[#allocation14] sm:$0xff] %v1979
    // Predicated region
    $region86: #{tpu_custom_call.1} parent=1 // pred_check
      _
    $region87: #{tpu_custom_call.1} parent=1 // pred_check_branch
      %1986 = sbr.rel (0) target = $region89
    $region88: #{tpu_custom_call.1} parent=1 // pred_region
      %s1988 = ssub.s32 128, 128
      %1989 = vsyncadd [#allocation6], %s1988
      %s1991 = sshll.u32 [#allocation14], 4
      %s1992 = int_to_ptr.vmem [resolvable:$true] %s1991
      %1994 = dma.vmem_to_hbm [thread:$0]  %s1992, 128, %s16, [#allocation6]
    $region89: #{tpu_custom_call.1} parent=1 // pred_fallthru
      _
    // Predicated region
    $region90: #{tpu_custom_call.1} parent=1 // pred_check
      _
    $region91: #{tpu_custom_call.1} parent=1 // pred_check_branch
      %1996 = sbr.rel (0) target = $region93
    $region92: #{tpu_custom_call.1} parent=1 // pred_region
      %1997 = dma.done [#allocation6], 128
    $region93: #{tpu_custom_call.1} parent=1 // pred_fallthru
      _
    %1998 = vsyncpa [#allocation5], 1
    %1999 = vsyncpa [#allocation12], 1
    %2000 = vsyncpa [#allocation6], 1
    %2001 = vsyncpa [#allocation7], 1
    %2002 = vsyncpa [#allocation8], 1

</llo_original>
